<compile_context>
chip_gen: v5e
topology: v5e:2x2
jax: 0.10.0
libtpu: 0.0.40
codegen_flags: <defaults>
</compile_context>

<pallas_src>
import jax
import jax.numpy as jnp
import numpy as np
from jax import lax
from jax.experimental import pallas as pl
from jax.experimental.pallas import tpu as pltpu


# ----------------------------------------------------------------------------
# Fused Pallas kernel: LSTM recurrence + 'mlp' attention + projection
# ----------------------------------------------------------------------------
def fused_atae_kernel(lmax_ref, len_ref, x_ref, asp_ref,
                      wih_ref, whh_ref, wk_ref, wq_ref, pw_ref, pack_ref,
                      out_ref):
    """Fused ATAE-LSTM forward.

    x_ref:    (L*Bp, E)   word embeddings, time-major rows (row = t*Bp + b)
    asp_ref:  (Bp, E)     aspect embeddings
    len_ref:  (Bp, 1)     valid lengths (int32);  lmax_ref: (1,) int32 (SMEM)
    wih_ref:  (2E, 4H)    LSTM input weight, gate order [i, f, o, g]
    whh_ref:  (H, 4H)     LSTM hidden weight, same gate order
    wk/wq:    (H, H)      attention key / query linears
    pw_ref:   (H, 128)    projection weight padded to 128 lanes
    pack_ref: (3, W)      row0 = b (4H), row1 = [bk|bq|w1|w2] (4H),
                          row2 = proj_b padded (128)
    out_ref:  (Bp, 128)   padded logits
    """
    Bp = asp_ref.shape[0]
    LB, E = x_ref.shape
    L = LB // Bp
    H = whh_ref.shape[0]
    H4 = whh_ref.shape[1]
    PPAD = out_ref.shape[1]

    # ---- packed small vectors (static lane/sublane slices, one tile) ------
    b_row = pack_ref[0:1, 0:H4]                                      # (1, 4H)
    bk = pack_ref[1:2, 0:H]
    bq = pack_ref[1:2, H:2 * H]
    w1 = pack_ref[1:2, 2 * H:3 * H]
    w2 = pack_ref[1:2, 3 * H:4 * H]
    pb = pack_ref[2:3, 0:PPAD]                                       # (1, 128)

    # ---- hoisted input projection: ONE MXU call covers every timestep -----
    gx = jnp.dot(x_ref[...], wih_ref[0:E, :],
                 preferred_element_type=jnp.float32)                 # (L*Bp, 4H)

    # time-invariant aspect contribution + bias (replaces [x ; aspect] concat)
    asp = asp_ref[...]                                               # (Bp, E)
    ga = (jnp.dot(asp, wih_ref[E:2 * E, :],
                  preferred_element_type=jnp.float32) + b_row)       # (Bp, 4H)

    whh = whh_ref[...]

    # ---- recurrence: only h @ W_hh + gate math on the serial path ---------
    # Gate order [i, f, o, g] -> one sigmoid over 3H lanes, one tanh over H.
    h = jnp.zeros((Bp, H), jnp.float32)
    c = jnp.zeros((Bp, H), jnp.float32)
    hs = []
    for t in range(L):                        # fully unrolled (static L)
        gates = (gx[t * Bp:(t + 1) * Bp, :] + ga
                 + jnp.dot(h, whh, preferred_element_type=jnp.float32))
        sig = jax.nn.sigmoid(gates[:, 0:3 * H])
        i_g = sig[:, 0:H]
        f_g = sig[:, H:2 * H]
        o_g = sig[:, 2 * H:3 * H]
        g_g = jnp.tanh(gates[:, 3 * H:4 * H])
        c = f_g * c + i_g * g_g
        h = o_g * jnp.tanh(c)
        hs.append(h)                          # raw h; masking hoisted below

    ho_raw = jnp.concatenate(hs, axis=0)                             # (L*Bp, H)

    # ---- hoisted packed-sequence mask: one full-width select ---------------
    # row r = t*Bp + b  ->  time index t (compile-time constant column)
    t_idx = jnp.concatenate(
        [jnp.full((Bp, 1), t, jnp.int32) for t in range(L)], axis=0)  # (L*Bp, 1)
    lens_big = jnp.concatenate([len_ref[...]] * L, axis=0)            # (L*Bp, 1)
    ho = jnp.where(t_idx < lens_big, ho_raw, 0.0)                     # (L*Bp, H)

    # ---- attention ('mlp' score, n_head = 1), batched over Bp --------------
    kx = (jnp.dot(ho, wk_ref[...],
                  preferred_element_type=jnp.float32) + bk)           # (L*Bp, H)
    qx = (jnp.dot(asp, wq_ref[...],
                  preferred_element_type=jnp.float32) + bq)           # (Bp, H)

    # score = tanh(kx . w1 + qx . w2): VPU multiply + lane reduce, full column
    sk = jnp.sum(kx * w1, axis=-1, keepdims=True)                     # (L*Bp, 1)
    sq = jnp.sum(qx * w2, axis=-1, keepdims=True)                     # (Bp, 1)
    sq_big = jnp.concatenate([sq] * L, axis=0)                        # (L*Bp, 1)
    s = jnp.tanh(sk + sq_big)                                         # one tanh

    # masked softmax over the first lmax key positions (k_len = max(x_len)).
    # scores are tanh outputs in [-1, 1] -> no max subtraction needed.
    lmax = lmax_ref[0]
    e = jnp.where(t_idx < lmax, jnp.exp(s), 0.0)                      # (L*Bp, 1)
    weighted = e * kx                                                 # (L*Bp, H)

    den = e[0:Bp]
    num = weighted[0:Bp]
    for t in range(1, L):                     # L-1 tile-aligned (Bp,H) adds
        den = den + e[t * Bp:(t + 1) * Bp]
        num = num + weighted[t * Bp:(t + 1) * Bp]
    out_vec = num / jnp.maximum(den, 1e-30)   # guard all-padding rows (lmax==0)

    # lane-dense final store: projection padded to 128 output lanes
    out_ref[...] = (jnp.dot(out_vec, pw_ref[...],
                            preferred_element_type=jnp.float32) + pb)  # (Bp, 128)


# ----------------------------------------------------------------------------
# Wrapper (plain-JAX glue: embedding gathers, batch padding, weight re-layout)
# ----------------------------------------------------------------------------
def atae_lstm_forward(text_indices, aspect_indices, params):
    emb = params['embedding']
    B, L = text_indices.shape                    # L == max_seq_len
    E = emb.shape[1]
    H = params['w_hh'].shape[0]
    P = params['proj_w'].shape[1]
    P_PAD = 128                                  # lane-dense output store
    assert E == H, "mlp attention here requires embed_dim == hidden_dim"

    # Pad batch (sublane) dim to a multiple of 8 so every (B,.) kernel tensor
    # is 8-sublane aligned. Pad rows use token 0 (x_len = 0) and are sliced
    # off the output; lmax over the padded batch equals lmax over real rows.
    Bp = ((B + 7) // 8) * 8
    text_p = jnp.zeros((Bp, L), jnp.int32).at[:B].set(text_indices)
    asp_p = jnp.zeros((Bp,), jnp.int32).at[:B].set(aspect_indices)

    # Embedding gathers (plain-JAX glue).  Gathering with transposed,
    # flattened indices yields the time-major (L*Bp, E) matrix the kernel
    # consumes directly: no float transpose / concat / broadcast anywhere.
    x2d = emb[text_p.T.reshape(-1)]                                  # (L*Bp, E)
    aspect = emb[asp_p]                                              # (Bp, E)
    x_len = jnp.sum(text_p != 0, axis=-1).astype(jnp.int32)          # (Bp,)
    lmax = jnp.max(x_len).reshape(1)                                 # k_len

    # Gate-column permutation [i, f, g, o] -> [i, f, o, g] so the kernel can
    # do one sigmoid over the first 3H lanes and one tanh over the last H.
    def reorder_gates(w):
        return jnp.concatenate(
            [w[..., :2 * H], w[..., 3 * H:4 * H], w[..., 2 * H:3 * H]], axis=-1)

    w_ih = reorder_gates(params['w_ih'])                             # (2E, 4H)
    w_hh = reorder_gates(params['w_hh'])                             # (H, 4H)
    b = reorder_gates(params['b'])                                   # (4H,)

    # Pack all small vectors into one VMEM tile (cuts DMA count / tile pad).
    W = max(4 * H, P_PAD)
    pack = jnp.zeros((3, W), jnp.float32)
    pack = pack.at[0, :4 * H].set(b)
    pack = pack.at[1, :4 * H].set(jnp.concatenate(
        [params['att_bk'], params['att_bq'],
         params['att_w'][:H], params['att_w'][H:]]))
    pack = pack.at[2, :P].set(params['proj_b'])

    # Pad the projection to 128 output lanes (single unmasked vector store).
    proj_w = jnp.zeros((H, P_PAD), jnp.float32).at[:, :P].set(params['proj_w'])

    vmem = pl.BlockSpec(memory_space=pltpu.MemorySpace.VMEM)
    smem = pl.BlockSpec(memory_space=pltpu.MemorySpace.SMEM)

    out_pad = pl.pallas_call(
        fused_atae_kernel,
        out_shape=jax.ShapeDtypeStruct((Bp, P_PAD), jnp.float32),
        in_specs=[smem] + [vmem] * 9,
        out_specs=vmem,
    )(lmax, x_len.reshape(Bp, 1), x2d, aspect,
      w_ih, w_hh, params['att_wk'], params['att_wq'], proj_w, pack)

    return out_pad[:B, :P]                       # torch.squeeze((B,1,P)) -> (B,P)


# ----------------------------------------------------------------------------
# Pure-JAX reference (mirrors the PyTorch forward) for verification
# ----------------------------------------------------------------------------
def reference_forward(text_indices, aspect_indices, params):
    emb = params['embedding']
    B, L = text_indices.shape
    H = params['w_hh'].shape[0]
    x = emb[text_indices]
    aspect = emb[aspect_indices]
    x_len = jnp.sum(text_indices != 0, axis=-1)
    xcat = jnp.concatenate(
        [x, jnp.broadcast_to(aspect[:, None, :], x.shape)], axis=-1)

    def step(carry, xt):
        h, c = carry
        g = xt @ params['w_ih'] + h @ params['w_hh'] + params['b']
        i_g = jax.nn.sigmoid(g[:, :H]); f_g = jax.nn.sigmoid(g[:, H:2 * H])
        g_g = jnp.tanh(g[:, 2 * H:3 * H]); o_g = jax.nn.sigmoid(g[:, 3 * H:])
        c = f_g * c + i_g * g_g
        h = o_g * jnp.tanh(c)
        return (h, c), h

    init = (jnp.zeros((B, H), jnp.float32), jnp.zeros((B, H), jnp.float32))
    _, hs = lax.scan(step, init, jnp.swapaxes(xcat, 0, 1))
    hs = jnp.swapaxes(hs, 0, 1)                                     # (B, L, H)
    tpos = jnp.arange(L)
    lstm_out = jnp.where(tpos[None, :, None] < x_len[:, None, None], hs, 0.0)

    kx = lstm_out @ params['att_wk'] + params['att_bk']
    qx = aspect @ params['att_wq'] + params['att_bq']
    score = jnp.tanh(kx @ params['att_w'][:H] + (qx @ params['att_w'][H:])[:, None])
    lmax = jnp.max(x_len)
    valid = tpos[None, :] < lmax
    score = jnp.where(valid, score, -1e30)
    attn = jax.nn.softmax(score, axis=-1)
    attn = jnp.where(valid, attn, 0.0)
    out_vec = jnp.einsum('bl,blh->bh', attn, kx)
    return out_vec @ params['proj_w'] + params['proj_b']


# ----------------------------------------------------------------------------
# Deterministic parameter setup + test
# ----------------------------------------------------------------------------
def make_params(key, vocab, embed_dim, hidden_dim, polarities):
    E, H, P = embed_dim, hidden_dim, polarities
    ks = jax.random.split(key, 12)
    s = 1.0 / np.sqrt(H)
    u = lambda k, shape: jax.random.uniform(k, shape, jnp.float32, -s, s)
    return dict(
        embedding=jax.random.normal(ks[0], (vocab, E), jnp.float32),
        # LSTM (input = 2E, hidden = H); b = b_ih + b_hh, gate order i,f,g,o
        w_ih=u(ks[1], (2 * E, 4 * H)),
        w_hh=u(ks[2], (H, 4 * H)),
        b=u(ks[3], (4 * H,)),
        # Attention(embed_dim=H, out_dim=P, score_function='mlp', n_head=1)
        att_wk=u(ks[4], (H, H)),
        att_bk=u(ks[5], (H,)),
        att_wq=u(ks[6], (H, H)),
        att_bq=u(ks[7], (H,)),
        att_w=u(ks[8], (2 * H,)),
        proj_w=u(ks[9], (H, P)),
        proj_b=u(ks[10], (P,)),
    )


if __name__ == "__main__":
    VOCAB, E, H, P = 50, 32, 32, 3      # embed_dim == hidden_dim (mlp attention)
    B, MAX_SEQ_LEN = 2, 8

    params = make_params(jax.random.PRNGKey(0), VOCAB, E, H, P)

    # deterministic small inputs; 0 is the pad token (trailing pads only)
    text_indices = jnp.array([[5, 12, 7, 3, 9, 0, 0, 0],
                              [4, 21, 33, 2, 15, 8, 11, 0]], dtype=jnp.int32)
    aspect_indices = jnp.array([6, 19], dtype=jnp.int32)

    out = atae_lstm_forward(text_indices, aspect_indices, params)
    out = jax.block_until_ready(out)

    ref = jax.block_until_ready(
        reference_forward(text_indices, aspect_indices, params))

    assert out.shape == (B, P)
    np.testing.assert_allclose(np.asarray(out), np.asarray(ref),
                               rtol=1e-4, atol=1e-4)
    print("KERNEL_OK")
</pallas_src>

<mosaic_0001>
module attributes {stable_mosaic.version = 11 : i64} {
  func.func @fused_atae_kernel(%arg0: memref<1xi32, #tpu.memory_space<smem>>, %arg1: memref<8x1xi32, #tpu.memory_space<vmem>>, %arg2: memref<64x32xf32, #tpu.memory_space<vmem>>, %arg3: memref<8x32xf32, #tpu.memory_space<vmem>>, %arg4: memref<64x128xf32, #tpu.memory_space<vmem>>, %arg5: memref<32x128xf32, #tpu.memory_space<vmem>>, %arg6: memref<32x32xf32, #tpu.memory_space<vmem>>, %arg7: memref<32x32xf32, #tpu.memory_space<vmem>>, %arg8: memref<32x128xf32, #tpu.memory_space<vmem>>, %arg9: memref<3x128xf32, #tpu.memory_space<vmem>>, %arg10: memref<8x128xf32, #tpu.memory_space<vmem>>) attributes {dimension_semantics = [], scalar_prefetch = 0 : i64, scratch_operands = 0 : i64, tpu.core_type = #tpu.core_type<tc>} {
    %c0 = arith.constant 0 : index
    %c0_0 = arith.constant 0 : index
    %0 = vector.load %arg9[%c0, %c0_0] : memref<3x128xf32, #tpu.memory_space<vmem>>, vector<1x128xf32>
    %c1 = arith.constant 1 : index
    %c0_1 = arith.constant 0 : index
    %1 = vector.load %arg9[%c1, %c0_1] : memref<3x128xf32, #tpu.memory_space<vmem>>, vector<1x32xf32>
    %c1_2 = arith.constant 1 : index
    %c32 = arith.constant 32 : index
    %2 = vector.load %arg9[%c1_2, %c32] : memref<3x128xf32, #tpu.memory_space<vmem>>, vector<1x32xf32>
    %c1_3 = arith.constant 1 : index
    %c64 = arith.constant 64 : index
    %3 = vector.load %arg9[%c1_3, %c64] : memref<3x128xf32, #tpu.memory_space<vmem>>, vector<1x32xf32>
    %c1_4 = arith.constant 1 : index
    %c96 = arith.constant 96 : index
    %4 = vector.load %arg9[%c1_4, %c96] : memref<3x128xf32, #tpu.memory_space<vmem>>, vector<1x32xf32>
    %c2 = arith.constant 2 : index
    %c0_5 = arith.constant 0 : index
    %5 = vector.load %arg9[%c2, %c0_5] : memref<3x128xf32, #tpu.memory_space<vmem>>, vector<1x128xf32>
    %c0_6 = arith.constant 0 : index
    %c0_7 = arith.constant 0 : index
    %6 = vector.load %arg2[%c0_6, %c0_7] : memref<64x32xf32, #tpu.memory_space<vmem>>, vector<64x32xf32>
    %c0_8 = arith.constant 0 : index
    %c0_9 = arith.constant 0 : index
    %7 = vector.load %arg4[%c0_8, %c0_9] : memref<64x128xf32, #tpu.memory_space<vmem>>, vector<32x128xf32>
    %cst = arith.constant dense<0.000000e+00> : vector<64x128xf32>
    %8 = tpu.matmul %6, %7, %cst {dimension_numbers = #tpu.dot_dimension_numbers<[1], [0], [0], [1], [0, 0, 1, 1], [], []>} : vector<64x32xf32>, vector<32x128xf32>, vector<64x128xf32> -> vector<64x128xf32>
    %c0_10 = arith.constant 0 : index
    %c0_11 = arith.constant 0 : index
    %9 = vector.load %arg3[%c0_10, %c0_11] : memref<8x32xf32, #tpu.memory_space<vmem>>, vector<8x32xf32>
    %c32_12 = arith.constant 32 : index
    %c0_13 = arith.constant 0 : index
    %10 = vector.load %arg4[%c32_12, %c0_13] : memref<64x128xf32, #tpu.memory_space<vmem>>, vector<32x128xf32>
    %cst_14 = arith.constant dense<0.000000e+00> : vector<8x128xf32>
    %11 = tpu.matmul %9, %10, %cst_14 {dimension_numbers = #tpu.dot_dimension_numbers<[1], [0], [0], [1], [0, 0, 1, 1], [], []>} : vector<8x32xf32>, vector<32x128xf32>, vector<8x128xf32> -> vector<8x128xf32>
    %12 = vector.broadcast %0 : vector<1x128xf32> to vector<8x128xf32>
    %13 = arith.addf %11, %12 : vector<8x128xf32>
    %c0_15 = arith.constant 0 : index
    %c0_16 = arith.constant 0 : index
    %14 = vector.load %arg5[%c0_15, %c0_16] : memref<32x128xf32, #tpu.memory_space<vmem>>, vector<32x128xf32>
    %cst_17 = arith.constant 0.000000e+00 : f32
    %15 = vector.broadcast %cst_17 : f32 to vector<8x32xf32>
    %cst_18 = arith.constant 0.000000e+00 : f32
    %16 = vector.broadcast %cst_18 : f32 to vector<8x32xf32>
    %17 = vector.extract_strided_slice %8 {offsets = [0, 0], sizes = [8, 128], strides = [1, 1]} : vector<64x128xf32> to vector<8x128xf32>
    %18 = arith.addf %17, %13 : vector<8x128xf32>
    %cst_19 = arith.constant dense<0.000000e+00> : vector<8x128xf32>
    %19 = tpu.matmul %15, %14, %cst_19 {dimension_numbers = #tpu.dot_dimension_numbers<[1], [0], [0], [1], [0, 0, 1, 1], [], []>} : vector<8x32xf32>, vector<32x128xf32>, vector<8x128xf32> -> vector<8x128xf32>
    %20 = arith.addf %18, %19 : vector<8x128xf32>
    %21 = vector.extract_strided_slice %20 {offsets = [0, 0], sizes = [8, 96], strides = [1, 1]} : vector<8x128xf32> to vector<8x96xf32>
    %22 = arith.negf %21 : vector<8x96xf32>
    %23 = math.exp %22 : vector<8x96xf32>
    %cst_20 = arith.constant 1.000000e+00 : f32
    %24 = vector.broadcast %cst_20 : f32 to vector<8x96xf32>
    %25 = arith.addf %24, %23 : vector<8x96xf32>
    %26 = arith.divf %24, %25 : vector<8x96xf32>
    %27 = vector.extract_strided_slice %26 {offsets = [0, 0], sizes = [8, 32], strides = [1, 1]} : vector<8x96xf32> to vector<8x32xf32>
    %28 = vector.extract_strided_slice %26 {offsets = [0, 32], sizes = [8, 32], strides = [1, 1]} : vector<8x96xf32> to vector<8x32xf32>
    %29 = vector.extract_strided_slice %26 {offsets = [0, 64], sizes = [8, 32], strides = [1, 1]} : vector<8x96xf32> to vector<8x32xf32>
    %30 = vector.extract_strided_slice %20 {offsets = [0, 96], sizes = [8, 32], strides = [1, 1]} : vector<8x128xf32> to vector<8x32xf32>
    %31 = math.tanh %30 : vector<8x32xf32>
    %32 = arith.mulf %28, %16 : vector<8x32xf32>
    %33 = arith.mulf %27, %31 : vector<8x32xf32>
    %34 = arith.addf %32, %33 : vector<8x32xf32>
    %35 = math.tanh %34 : vector<8x32xf32>
    %36 = arith.mulf %29, %35 : vector<8x32xf32>
    %37 = vector.extract_strided_slice %8 {offsets = [8, 0], sizes = [8, 128], strides = [1, 1]} : vector<64x128xf32> to vector<8x128xf32>
    %38 = arith.addf %37, %13 : vector<8x128xf32>
    %cst_21 = arith.constant dense<0.000000e+00> : vector<8x128xf32>
    %39 = tpu.matmul %36, %14, %cst_21 {dimension_numbers = #tpu.dot_dimension_numbers<[1], [0], [0], [1], [0, 0, 1, 1], [], []>} : vector<8x32xf32>, vector<32x128xf32>, vector<8x128xf32> -> vector<8x128xf32>
    %40 = arith.addf %38, %39 : vector<8x128xf32>
    %41 = vector.extract_strided_slice %40 {offsets = [0, 0], sizes = [8, 96], strides = [1, 1]} : vector<8x128xf32> to vector<8x96xf32>
    %42 = arith.negf %41 : vector<8x96xf32>
    %43 = math.exp %42 : vector<8x96xf32>
    %cst_22 = arith.constant 1.000000e+00 : f32
    %44 = vector.broadcast %cst_22 : f32 to vector<8x96xf32>
    %45 = arith.addf %44, %43 : vector<8x96xf32>
    %46 = arith.divf %44, %45 : vector<8x96xf32>
    %47 = vector.extract_strided_slice %46 {offsets = [0, 0], sizes = [8, 32], strides = [1, 1]} : vector<8x96xf32> to vector<8x32xf32>
    %48 = vector.extract_strided_slice %46 {offsets = [0, 32], sizes = [8, 32], strides = [1, 1]} : vector<8x96xf32> to vector<8x32xf32>
    %49 = vector.extract_strided_slice %46 {offsets = [0, 64], sizes = [8, 32], strides = [1, 1]} : vector<8x96xf32> to vector<8x32xf32>
    %50 = vector.extract_strided_slice %40 {offsets = [0, 96], sizes = [8, 32], strides = [1, 1]} : vector<8x128xf32> to vector<8x32xf32>
    %51 = math.tanh %50 : vector<8x32xf32>
    %52 = arith.mulf %48, %34 : vector<8x32xf32>
    %53 = arith.mulf %47, %51 : vector<8x32xf32>
    %54 = arith.addf %52, %53 : vector<8x32xf32>
    %55 = math.tanh %54 : vector<8x32xf32>
    %56 = arith.mulf %49, %55 : vector<8x32xf32>
    %57 = vector.extract_strided_slice %8 {offsets = [16, 0], sizes = [8, 128], strides = [1, 1]} : vector<64x128xf32> to vector<8x128xf32>
    %58 = arith.addf %57, %13 : vector<8x128xf32>
    %cst_23 = arith.constant dense<0.000000e+00> : vector<8x128xf32>
    %59 = tpu.matmul %56, %14, %cst_23 {dimension_numbers = #tpu.dot_dimension_numbers<[1], [0], [0], [1], [0, 0, 1, 1], [], []>} : vector<8x32xf32>, vector<32x128xf32>, vector<8x128xf32> -> vector<8x128xf32>
    %60 = arith.addf %58, %59 : vector<8x128xf32>
    %61 = vector.extract_strided_slice %60 {offsets = [0, 0], sizes = [8, 96], strides = [1, 1]} : vector<8x128xf32> to vector<8x96xf32>
    %62 = arith.negf %61 : vector<8x96xf32>
    %63 = math.exp %62 : vector<8x96xf32>
    %cst_24 = arith.constant 1.000000e+00 : f32
    %64 = vector.broadcast %cst_24 : f32 to vector<8x96xf32>
    %65 = arith.addf %64, %63 : vector<8x96xf32>
    %66 = arith.divf %64, %65 : vector<8x96xf32>
    %67 = vector.extract_strided_slice %66 {offsets = [0, 0], sizes = [8, 32], strides = [1, 1]} : vector<8x96xf32> to vector<8x32xf32>
    %68 = vector.extract_strided_slice %66 {offsets = [0, 32], sizes = [8, 32], strides = [1, 1]} : vector<8x96xf32> to vector<8x32xf32>
    %69 = vector.extract_strided_slice %66 {offsets = [0, 64], sizes = [8, 32], strides = [1, 1]} : vector<8x96xf32> to vector<8x32xf32>
    %70 = vector.extract_strided_slice %60 {offsets = [0, 96], sizes = [8, 32], strides = [1, 1]} : vector<8x128xf32> to vector<8x32xf32>
    %71 = math.tanh %70 : vector<8x32xf32>
    %72 = arith.mulf %68, %54 : vector<8x32xf32>
    %73 = arith.mulf %67, %71 : vector<8x32xf32>
    %74 = arith.addf %72, %73 : vector<8x32xf32>
    %75 = math.tanh %74 : vector<8x32xf32>
    %76 = arith.mulf %69, %75 : vector<8x32xf32>
    %77 = vector.extract_strided_slice %8 {offsets = [24, 0], sizes = [8, 128], strides = [1, 1]} : vector<64x128xf32> to vector<8x128xf32>
    %78 = arith.addf %77, %13 : vector<8x128xf32>
    %cst_25 = arith.constant dense<0.000000e+00> : vector<8x128xf32>
    %79 = tpu.matmul %76, %14, %cst_25 {dimension_numbers = #tpu.dot_dimension_numbers<[1], [0], [0], [1], [0, 0, 1, 1], [], []>} : vector<8x32xf32>, vector<32x128xf32>, vector<8x128xf32> -> vector<8x128xf32>
    %80 = arith.addf %78, %79 : vector<8x128xf32>
    %81 = vector.extract_strided_slice %80 {offsets = [0, 0], sizes = [8, 96], strides = [1, 1]} : vector<8x128xf32> to vector<8x96xf32>
    %82 = arith.negf %81 : vector<8x96xf32>
    %83 = math.exp %82 : vector<8x96xf32>
    %cst_26 = arith.constant 1.000000e+00 : f32
    %84 = vector.broadcast %cst_26 : f32 to vector<8x96xf32>
    %85 = arith.addf %84, %83 : vector<8x96xf32>
    %86 = arith.divf %84, %85 : vector<8x96xf32>
    %87 = vector.extract_strided_slice %86 {offsets = [0, 0], sizes = [8, 32], strides = [1, 1]} : vector<8x96xf32> to vector<8x32xf32>
    %88 = vector.extract_strided_slice %86 {offsets = [0, 32], sizes = [8, 32], strides = [1, 1]} : vector<8x96xf32> to vector<8x32xf32>
    %89 = vector.extract_strided_slice %86 {offsets = [0, 64], sizes = [8, 32], strides = [1, 1]} : vector<8x96xf32> to vector<8x32xf32>
    %90 = vector.extract_strided_slice %80 {offsets = [0, 96], sizes = [8, 32], strides = [1, 1]} : vector<8x128xf32> to vector<8x32xf32>
    %91 = math.tanh %90 : vector<8x32xf32>
    %92 = arith.mulf %88, %74 : vector<8x32xf32>
    %93 = arith.mulf %87, %91 : vector<8x32xf32>
    %94 = arith.addf %92, %93 : vector<8x32xf32>
    %95 = math.tanh %94 : vector<8x32xf32>
    %96 = arith.mulf %89, %95 : vector<8x32xf32>
    %97 = vector.extract_strided_slice %8 {offsets = [32, 0], sizes = [8, 128], strides = [1, 1]} : vector<64x128xf32> to vector<8x128xf32>
    %98 = arith.addf %97, %13 : vector<8x128xf32>
    %cst_27 = arith.constant dense<0.000000e+00> : vector<8x128xf32>
    %99 = tpu.matmul %96, %14, %cst_27 {dimension_numbers = #tpu.dot_dimension_numbers<[1], [0], [0], [1], [0, 0, 1, 1], [], []>} : vector<8x32xf32>, vector<32x128xf32>, vector<8x128xf32> -> vector<8x128xf32>
    %100 = arith.addf %98, %99 : vector<8x128xf32>
    %101 = vector.extract_strided_slice %100 {offsets = [0, 0], sizes = [8, 96], strides = [1, 1]} : vector<8x128xf32> to vector<8x96xf32>
    %102 = arith.negf %101 : vector<8x96xf32>
    %103 = math.exp %102 : vector<8x96xf32>
    %cst_28 = arith.constant 1.000000e+00 : f32
    %104 = vector.broadcast %cst_28 : f32 to vector<8x96xf32>
    %105 = arith.addf %104, %103 : vector<8x96xf32>
    %106 = arith.divf %104, %105 : vector<8x96xf32>
    %107 = vector.extract_strided_slice %106 {offsets = [0, 0], sizes = [8, 32], strides = [1, 1]} : vector<8x96xf32> to vector<8x32xf32>
    %108 = vector.extract_strided_slice %106 {offsets = [0, 32], sizes = [8, 32], strides = [1, 1]} : vector<8x96xf32> to vector<8x32xf32>
    %109 = vector.extract_strided_slice %106 {offsets = [0, 64], sizes = [8, 32], strides = [1, 1]} : vector<8x96xf32> to vector<8x32xf32>
    %110 = vector.extract_strided_slice %100 {offsets = [0, 96], sizes = [8, 32], strides = [1, 1]} : vector<8x128xf32> to vector<8x32xf32>
    %111 = math.tanh %110 : vector<8x32xf32>
    %112 = arith.mulf %108, %94 : vector<8x32xf32>
    %113 = arith.mulf %107, %111 : vector<8x32xf32>
    %114 = arith.addf %112, %113 : vector<8x32xf32>
    %115 = math.tanh %114 : vector<8x32xf32>
    %116 = arith.mulf %109, %115 : vector<8x32xf32>
    %117 = vector.extract_strided_slice %8 {offsets = [40, 0], sizes = [8, 128], strides = [1, 1]} : vector<64x128xf32> to vector<8x128xf32>
    %118 = arith.addf %117, %13 : vector<8x128xf32>
    %cst_29 = arith.constant dense<0.000000e+00> : vector<8x128xf32>
    %119 = tpu.matmul %116, %14, %cst_29 {dimension_numbers = #tpu.dot_dimension_numbers<[1], [0], [0], [1], [0, 0, 1, 1], [], []>} : vector<8x32xf32>, vector<32x128xf32>, vector<8x128xf32> -> vector<8x128xf32>
    %120 = arith.addf %118, %119 : vector<8x128xf32>
    %121 = vector.extract_strided_slice %120 {offsets = [0, 0], sizes = [8, 96], strides = [1, 1]} : vector<8x128xf32> to vector<8x96xf32>
    %122 = arith.negf %121 : vector<8x96xf32>
    %123 = math.exp %122 : vector<8x96xf32>
    %cst_30 = arith.constant 1.000000e+00 : f32
    %124 = vector.broadcast %cst_30 : f32 to vector<8x96xf32>
    %125 = arith.addf %124, %123 : vector<8x96xf32>
    %126 = arith.divf %124, %125 : vector<8x96xf32>
    %127 = vector.extract_strided_slice %126 {offsets = [0, 0], sizes = [8, 32], strides = [1, 1]} : vector<8x96xf32> to vector<8x32xf32>
    %128 = vector.extract_strided_slice %126 {offsets = [0, 32], sizes = [8, 32], strides = [1, 1]} : vector<8x96xf32> to vector<8x32xf32>
    %129 = vector.extract_strided_slice %126 {offsets = [0, 64], sizes = [8, 32], strides = [1, 1]} : vector<8x96xf32> to vector<8x32xf32>
    %130 = vector.extract_strided_slice %120 {offsets = [0, 96], sizes = [8, 32], strides = [1, 1]} : vector<8x128xf32> to vector<8x32xf32>
    %131 = math.tanh %130 : vector<8x32xf32>
    %132 = arith.mulf %128, %114 : vector<8x32xf32>
    %133 = arith.mulf %127, %131 : vector<8x32xf32>
    %134 = arith.addf %132, %133 : vector<8x32xf32>
    %135 = math.tanh %134 : vector<8x32xf32>
    %136 = arith.mulf %129, %135 : vector<8x32xf32>
    %137 = vector.extract_strided_slice %8 {offsets = [48, 0], sizes = [8, 128], strides = [1, 1]} : vector<64x128xf32> to vector<8x128xf32>
    %138 = arith.addf %137, %13 : vector<8x128xf32>
    %cst_31 = arith.constant dense<0.000000e+00> : vector<8x128xf32>
    %139 = tpu.matmul %136, %14, %cst_31 {dimension_numbers = #tpu.dot_dimension_numbers<[1], [0], [0], [1], [0, 0, 1, 1], [], []>} : vector<8x32xf32>, vector<32x128xf32>, vector<8x128xf32> -> vector<8x128xf32>
    %140 = arith.addf %138, %139 : vector<8x128xf32>
    %141 = vector.extract_strided_slice %140 {offsets = [0, 0], sizes = [8, 96], strides = [1, 1]} : vector<8x128xf32> to vector<8x96xf32>
    %142 = arith.negf %141 : vector<8x96xf32>
    %143 = math.exp %142 : vector<8x96xf32>
    %cst_32 = arith.constant 1.000000e+00 : f32
    %144 = vector.broadcast %cst_32 : f32 to vector<8x96xf32>
    %145 = arith.addf %144, %143 : vector<8x96xf32>
    %146 = arith.divf %144, %145 : vector<8x96xf32>
    %147 = vector.extract_strided_slice %146 {offsets = [0, 0], sizes = [8, 32], strides = [1, 1]} : vector<8x96xf32> to vector<8x32xf32>
    %148 = vector.extract_strided_slice %146 {offsets = [0, 32], sizes = [8, 32], strides = [1, 1]} : vector<8x96xf32> to vector<8x32xf32>
    %149 = vector.extract_strided_slice %146 {offsets = [0, 64], sizes = [8, 32], strides = [1, 1]} : vector<8x96xf32> to vector<8x32xf32>
    %150 = vector.extract_strided_slice %140 {offsets = [0, 96], sizes = [8, 32], strides = [1, 1]} : vector<8x128xf32> to vector<8x32xf32>
    %151 = math.tanh %150 : vector<8x32xf32>
    %152 = arith.mulf %148, %134 : vector<8x32xf32>
    %153 = arith.mulf %147, %151 : vector<8x32xf32>
    %154 = arith.addf %152, %153 : vector<8x32xf32>
    %155 = math.tanh %154 : vector<8x32xf32>
    %156 = arith.mulf %149, %155 : vector<8x32xf32>
    %157 = vector.extract_strided_slice %8 {offsets = [56, 0], sizes = [8, 128], strides = [1, 1]} : vector<64x128xf32> to vector<8x128xf32>
    %158 = arith.addf %157, %13 : vector<8x128xf32>
    %cst_33 = arith.constant dense<0.000000e+00> : vector<8x128xf32>
    %159 = tpu.matmul %156, %14, %cst_33 {dimension_numbers = #tpu.dot_dimension_numbers<[1], [0], [0], [1], [0, 0, 1, 1], [], []>} : vector<8x32xf32>, vector<32x128xf32>, vector<8x128xf32> -> vector<8x128xf32>
    %160 = arith.addf %158, %159 : vector<8x128xf32>
    %161 = vector.extract_strided_slice %160 {offsets = [0, 0], sizes = [8, 96], strides = [1, 1]} : vector<8x128xf32> to vector<8x96xf32>
    %162 = arith.negf %161 : vector<8x96xf32>
    %163 = math.exp %162 : vector<8x96xf32>
    %cst_34 = arith.constant 1.000000e+00 : f32
    %164 = vector.broadcast %cst_34 : f32 to vector<8x96xf32>
    %165 = arith.addf %164, %163 : vector<8x96xf32>
    %166 = arith.divf %164, %165 : vector<8x96xf32>
    %167 = vector.extract_strided_slice %166 {offsets = [0, 0], sizes = [8, 32], strides = [1, 1]} : vector<8x96xf32> to vector<8x32xf32>
    %168 = vector.extract_strided_slice %166 {offsets = [0, 32], sizes = [8, 32], strides = [1, 1]} : vector<8x96xf32> to vector<8x32xf32>
    %169 = vector.extract_strided_slice %166 {offsets = [0, 64], sizes = [8, 32], strides = [1, 1]} : vector<8x96xf32> to vector<8x32xf32>
    %170 = vector.extract_strided_slice %160 {offsets = [0, 96], sizes = [8, 32], strides = [1, 1]} : vector<8x128xf32> to vector<8x32xf32>
    %171 = math.tanh %170 : vector<8x32xf32>
    %172 = arith.mulf %168, %154 : vector<8x32xf32>
    %173 = arith.mulf %167, %171 : vector<8x32xf32>
    %174 = arith.addf %172, %173 : vector<8x32xf32>
    %175 = math.tanh %174 : vector<8x32xf32>
    %176 = arith.mulf %169, %175 : vector<8x32xf32>
    %177 = tpu.concatenate %36, %56, %76, %96, %116, %136, %156, %176 in 0 : vector<8x32xf32>, vector<8x32xf32>, vector<8x32xf32>, vector<8x32xf32>, vector<8x32xf32>, vector<8x32xf32>, vector<8x32xf32>, vector<8x32xf32> -> vector<64x32xf32>
    %c0_i32 = arith.constant 0 : i32
    %178 = vector.broadcast %c0_i32 : i32 to vector<8x1xi32>
    %c1_i32 = arith.constant 1 : i32
    %179 = vector.broadcast %c1_i32 : i32 to vector<8x1xi32>
    %c2_i32 = arith.constant 2 : i32
    %180 = vector.broadcast %c2_i32 : i32 to vector<8x1xi32>
    %c3_i32 = arith.constant 3 : i32
    %181 = vector.broadcast %c3_i32 : i32 to vector<8x1xi32>
    %c4_i32 = arith.constant 4 : i32
    %182 = vector.broadcast %c4_i32 : i32 to vector<8x1xi32>
    %c5_i32 = arith.constant 5 : i32
    %183 = vector.broadcast %c5_i32 : i32 to vector<8x1xi32>
    %c6_i32 = arith.constant 6 : i32
    %184 = vector.broadcast %c6_i32 : i32 to vector<8x1xi32>
    %c7_i32 = arith.constant 7 : i32
    %185 = vector.broadcast %c7_i32 : i32 to vector<8x1xi32>
    %186 = tpu.concatenate %178, %179, %180, %181, %182, %183, %184, %185 in 0 : vector<8x1xi32>, vector<8x1xi32>, vector<8x1xi32>, vector<8x1xi32>, vector<8x1xi32>, vector<8x1xi32>, vector<8x1xi32>, vector<8x1xi32> -> vector<64x1xi32>
    %c0_35 = arith.constant 0 : index
    %c0_36 = arith.constant 0 : index
    %187 = vector.load %arg1[%c0_35, %c0_36] : memref<8x1xi32, #tpu.memory_space<vmem>>, vector<8x1xi32>
    %188 = tpu.concatenate %187, %187, %187, %187, %187, %187, %187, %187 in 0 : vector<8x1xi32>, vector<8x1xi32>, vector<8x1xi32>, vector<8x1xi32>, vector<8x1xi32>, vector<8x1xi32>, vector<8x1xi32>, vector<8x1xi32> -> vector<64x1xi32>
    %189 = arith.cmpi slt, %186, %188 : vector<64x1xi32>
    %cst_37 = arith.constant 0.000000e+00 : f32
    %190 = vector.shape_cast %189 : vector<64x1xi1> to vector<64x1xi1>
    %191 = vector.broadcast %190 : vector<64x1xi1> to vector<64x32xi1>
    %192 = vector.broadcast %cst_37 : f32 to vector<64x32xf32>
    %193 = arith.select %191, %177, %192 : vector<64x32xi1>, vector<64x32xf32>
    %c0_38 = arith.constant 0 : index
    %c0_39 = arith.constant 0 : index
    %194 = vector.load %arg6[%c0_38, %c0_39] : memref<32x32xf32, #tpu.memory_space<vmem>>, vector<32x32xf32>
    %cst_40 = arith.constant dense<0.000000e+00> : vector<64x32xf32>
    %195 = tpu.matmul %193, %194, %cst_40 {dimension_numbers = #tpu.dot_dimension_numbers<[1], [0], [0], [1], [0, 0, 1, 1], [], []>} : vector<64x32xf32>, vector<32x32xf32>, vector<64x32xf32> -> vector<64x32xf32>
    %196 = vector.broadcast %1 : vector<1x32xf32> to vector<64x32xf32>
    %197 = arith.addf %195, %196 : vector<64x32xf32>
    %c0_41 = arith.constant 0 : index
    %c0_42 = arith.constant 0 : index
    %198 = vector.load %arg7[%c0_41, %c0_42] : memref<32x32xf32, #tpu.memory_space<vmem>>, vector<32x32xf32>
    %cst_43 = arith.constant dense<0.000000e+00> : vector<8x32xf32>
    %199 = tpu.matmul %9, %198, %cst_43 {dimension_numbers = #tpu.dot_dimension_numbers<[1], [0], [0], [1], [0, 0, 1, 1], [], []>} : vector<8x32xf32>, vector<32x32xf32>, vector<8x32xf32> -> vector<8x32xf32>
    %200 = vector.broadcast %2 : vector<1x32xf32> to vector<8x32xf32>
    %201 = arith.addf %199, %200 : vector<8x32xf32>
    %202 = vector.broadcast %3 : vector<1x32xf32> to vector<64x32xf32>
    %203 = arith.mulf %197, %202 : vector<64x32xf32>
    %cst_44 = arith.constant dense<0.000000e+00> : vector<64xf32>
    %204 = vector.multi_reduction <add>, %203, %cst_44 [1] : vector<64x32xf32> to vector<64xf32>
    %205 = vector.shape_cast %204 : vector<64xf32> to vector<64x1xf32>
    %206 = vector.broadcast %4 : vector<1x32xf32> to vector<8x32xf32>
    %207 = arith.mulf %201, %206 : vector<8x32xf32>
    %cst_45 = arith.constant dense<0.000000e+00> : vector<8xf32>
    %208 = vector.multi_reduction <add>, %207, %cst_45 [1] : vector<8x32xf32> to vector<8xf32>
    %209 = vector.shape_cast %208 : vector<8xf32> to vector<8x1xf32>
    %210 = tpu.concatenate %209, %209, %209, %209, %209, %209, %209, %209 in 0 : vector<8x1xf32>, vector<8x1xf32>, vector<8x1xf32>, vector<8x1xf32>, vector<8x1xf32>, vector<8x1xf32>, vector<8x1xf32>, vector<8x1xf32> -> vector<64x1xf32>
    %211 = arith.addf %205, %210 : vector<64x1xf32>
    %212 = math.tanh %211 : vector<64x1xf32>
    %c0_46 = arith.constant 0 : index
    %213 = memref.load %arg0[%c0_46] : memref<1xi32, #tpu.memory_space<smem>>
    %214 = vector.broadcast %213 : i32 to vector<64x1xi32>
    %215 = arith.cmpi slt, %186, %214 : vector<64x1xi32>
    %216 = math.exp %212 : vector<64x1xf32>
    %cst_47 = arith.constant 0.000000e+00 : f32
    %217 = vector.broadcast %cst_47 : f32 to vector<64x1xf32>
    %218 = arith.select %215, %216, %217 : vector<64x1xi1>, vector<64x1xf32>
    %219 = vector.broadcast %218 : vector<64x1xf32> to vector<64x32xf32>
    %220 = arith.mulf %219, %197 : vector<64x32xf32>
    %221 = vector.extract_strided_slice %218 {offsets = [0, 0], sizes = [8, 1], strides = [1, 1]} : vector<64x1xf32> to vector<8x1xf32>
    %222 = vector.extract_strided_slice %220 {offsets = [0, 0], sizes = [8, 32], strides = [1, 1]} : vector<64x32xf32> to vector<8x32xf32>
    %223 = vector.extract_strided_slice %218 {offsets = [8, 0], sizes = [8, 1], strides = [1, 1]} : vector<64x1xf32> to vector<8x1xf32>
    %224 = arith.addf %221, %223 : vector<8x1xf32>
    %225 = vector.extract_strided_slice %220 {offsets = [8, 0], sizes = [8, 32], strides = [1, 1]} : vector<64x32xf32> to vector<8x32xf32>
    %226 = arith.addf %222, %225 : vector<8x32xf32>
    %227 = vector.extract_strided_slice %218 {offsets = [16, 0], sizes = [8, 1], strides = [1, 1]} : vector<64x1xf32> to vector<8x1xf32>
    %228 = arith.addf %224, %227 : vector<8x1xf32>
    %229 = vector.extract_strided_slice %220 {offsets = [16, 0], sizes = [8, 32], strides = [1, 1]} : vector<64x32xf32> to vector<8x32xf32>
    %230 = arith.addf %226, %229 : vector<8x32xf32>
    %231 = vector.extract_strided_slice %218 {offsets = [24, 0], sizes = [8, 1], strides = [1, 1]} : vector<64x1xf32> to vector<8x1xf32>
    %232 = arith.addf %228, %231 : vector<8x1xf32>
    %233 = vector.extract_strided_slice %220 {offsets = [24, 0], sizes = [8, 32], strides = [1, 1]} : vector<64x32xf32> to vector<8x32xf32>
    %234 = arith.addf %230, %233 : vector<8x32xf32>
    %235 = vector.extract_strided_slice %218 {offsets = [32, 0], sizes = [8, 1], strides = [1, 1]} : vector<64x1xf32> to vector<8x1xf32>
    %236 = arith.addf %232, %235 : vector<8x1xf32>
    %237 = vector.extract_strided_slice %220 {offsets = [32, 0], sizes = [8, 32], strides = [1, 1]} : vector<64x32xf32> to vector<8x32xf32>
    %238 = arith.addf %234, %237 : vector<8x32xf32>
    %239 = vector.extract_strided_slice %218 {offsets = [40, 0], sizes = [8, 1], strides = [1, 1]} : vector<64x1xf32> to vector<8x1xf32>
    %240 = arith.addf %236, %239 : vector<8x1xf32>
    %241 = vector.extract_strided_slice %220 {offsets = [40, 0], sizes = [8, 32], strides = [1, 1]} : vector<64x32xf32> to vector<8x32xf32>
    %242 = arith.addf %238, %241 : vector<8x32xf32>
    %243 = vector.extract_strided_slice %218 {offsets = [48, 0], sizes = [8, 1], strides = [1, 1]} : vector<64x1xf32> to vector<8x1xf32>
    %244 = arith.addf %240, %243 : vector<8x1xf32>
    %245 = vector.extract_strided_slice %220 {offsets = [48, 0], sizes = [8, 32], strides = [1, 1]} : vector<64x32xf32> to vector<8x32xf32>
    %246 = arith.addf %242, %245 : vector<8x32xf32>
    %247 = vector.extract_strided_slice %218 {offsets = [56, 0], sizes = [8, 1], strides = [1, 1]} : vector<64x1xf32> to vector<8x1xf32>
    %248 = arith.addf %244, %247 : vector<8x1xf32>
    %249 = vector.extract_strided_slice %220 {offsets = [56, 0], sizes = [8, 32], strides = [1, 1]} : vector<64x32xf32> to vector<8x32xf32>
    %250 = arith.addf %246, %249 : vector<8x32xf32>
    %cst_48 = arith.constant 1.000000e-30 : f32
    %251 = vector.broadcast %cst_48 : f32 to vector<8x1xf32>
    %252 = arith.maximumf %248, %251 : vector<8x1xf32>
    %253 = vector.broadcast %252 : vector<8x1xf32> to vector<8x32xf32>
    %254 = arith.divf %250, %253 : vector<8x32xf32>
    %c0_49 = arith.constant 0 : index
    %c0_50 = arith.constant 0 : index
    %255 = vector.load %arg8[%c0_49, %c0_50] : memref<32x128xf32, #tpu.memory_space<vmem>>, vector<32x128xf32>
    %cst_51 = arith.constant dense<0.000000e+00> : vector<8x128xf32>
    %256 = tpu.matmul %254, %255, %cst_51 {dimension_numbers = #tpu.dot_dimension_numbers<[1], [0], [0], [1], [0, 0, 1, 1], [], []>} : vector<8x32xf32>, vector<32x128xf32>, vector<8x128xf32> -> vector<8x128xf32>
    %257 = vector.broadcast %5 : vector<1x128xf32> to vector<8x128xf32>
    %258 = arith.addf %256, %257 : vector<8x128xf32>
    %c0_52 = arith.constant 0 : index
    %c0_53 = arith.constant 0 : index
    %259 = vector.load %arg10[%c0_52, %c0_53] : memref<8x128xf32, #tpu.memory_space<vmem>>, vector<8x128xf32>
    tpu.vector_store %arg10[%c0_52, %c0_53], %258 {strides = array<i32>} : memref<8x128xf32, #tpu.memory_space<vmem>>, vector<8x128xf32>,
    return
  }
}

</mosaic_0001>

<llo_original>
// kernel: tpu_custom_call.1
$region0: #{tpu_custom_call.1}
  #allocation0 [shape = 'u32[]', space=smem, size = 0x4, offset = 0x4, fixed_abs, tag = 'smem constant byte address 0x4 - core index']
  #allocation1 [shape = 'u32[72,128]{1,0:T(1,128)}', space=vmem, size = 0x9000, scoped, tag = 'internal scratch']
  #allocation2 [shape = 's32[1]{0:T(128)S(6)}', space=smem, size = 0x200, scoped, tag = 'scoped memory for tpu_custom_call.1']
  %s0 = inlined_call_operand.<no memory space> [shape: s32[1], index: 0, kind: input, shape index: {}]
  %s1 = inlined_call_operand.vmem [shape: s32[8,1], index: 1, kind: input, shape index: {}]
  %s2 = inlined_call_operand.vmem [shape: f32[64,32], index: 2, kind: input, shape index: {}]
  %s3 = inlined_call_operand.vmem [shape: f32[8,32], index: 3, kind: input, shape index: {}]
  %s4 = inlined_call_operand.vmem [shape: f32[64,128], index: 4, kind: input, shape index: {}]
  %s5 = inlined_call_operand.vmem [shape: f32[32,128], index: 5, kind: input, shape index: {}]
  %s6 = inlined_call_operand.hbm [shape: f32[32,32], index: 6, kind: input, shape index: {}]
  %s7 = inlined_call_operand.hbm [shape: f32[32,32], index: 7, kind: input, shape index: {}]
  %s8 = inlined_call_operand.hbm [shape: f32[32,128], index: 8, kind: input, shape index: {}]
  %s9 = inlined_call_operand.vmem [shape: f32[3,128], index: 9, kind: input, shape index: {}]
  %s10 = inlined_call_operand.hbm [shape: f32[8,128], index: 10, kind: output, shape index: {}]
  %s11 = sld [smem:[#allocation0]]
  $region62: #{tpu_custom_call.1} parent=0
    _
  %s13 = ssub.s32 1, %s11
  %s14 = scalar_select 0, %s13, %s11
  %15 = sst [smem:[#allocation2]] %s0
  $region1: #{tpu_custom_call.1} parent=0
    #allocation3 [shape = 'u8[16384]{0}', space=vmem, size = 0x4000, scoped, tag = 'input window, operand 6, single buffered']
    #allocation4 [shape = 's32[1]{0}', space=sflag, size = 0x4, scoped, tag = 'scoped memory for tpu_custom_call.1']
    #allocation5 [shape = 's32[1]{0}', space=sflag, size = 0x4, scoped, tag = 'scoped memory for tpu_custom_call.1']
    #allocation6 [shape = 'u8[16384]{0}', space=vmem, size = 0x4000, scoped, tag = 'input window, operand 7, single buffered']
    #allocation7 [shape = 's32[1]{0}', space=sflag, size = 0x4, scoped, tag = 'scoped memory for tpu_custom_call.1']
    #allocation8 [shape = 'u8[16384]{0}', space=vmem, size = 0x4000, scoped, tag = 'input window, operand 8, single buffered']
    #allocation9 [shape = 'u8[4096]{0}', space=vmem, size = 0x1000, scoped, tag = 'output window, operand 0, single buffered']
    %16 = vsyncpa [#allocation4], 0
    %17 = vsyncpa [#allocation7], 0
    %18 = vsyncpa [#allocation5], 0
    // Predicated region
    $region2: #{tpu_custom_call.1} parent=1 // pred_check
      _
    $region3: #{tpu_custom_call.1} parent=1 // pred_check_branch
      %20 = sbr.rel (0) target = $region5
    $region4: #{tpu_custom_call.1} parent=1 // pred_region
      _
    $region5: #{tpu_custom_call.1} parent=1 // pred_fallthru
      _
    // Predicated region
    $region6: #{tpu_custom_call.1} parent=1 // pred_check
      _
    $region7: #{tpu_custom_call.1} parent=1 // pred_check_branch
      %22 = sbr.rel (0) target = $region9
    $region8: #{tpu_custom_call.1} parent=1 // pred_region
      _
    $region9: #{tpu_custom_call.1} parent=1 // pred_fallthru
      _
    // Predicated region
    $region10: #{tpu_custom_call.1} parent=1 // pred_check
      _
    $region11: #{tpu_custom_call.1} parent=1 // pred_check_branch
      %24 = sbr.rel (0) target = $region13
    $region12: #{tpu_custom_call.1} parent=1 // pred_region
      _
    $region13: #{tpu_custom_call.1} parent=1 // pred_fallthru
      _
    // Predicated region
    $region14: #{tpu_custom_call.1} parent=1 // pred_check
      _
    $region15: #{tpu_custom_call.1} parent=1 // pred_check_branch
      %26 = sbr.rel (0) target = $region17
    $region16: #{tpu_custom_call.1} parent=1 // pred_region
      _
    $region17: #{tpu_custom_call.1} parent=1 // pred_fallthru
      _
    // Predicated region
    $region18: #{tpu_custom_call.1} parent=1 // pred_check
      _
    $region19: #{tpu_custom_call.1} parent=1 // pred_check_branch
      %28 = sbr.rel (0) target = $region21
    $region20: #{tpu_custom_call.1} parent=1 // pred_region
      _
    $region21: #{tpu_custom_call.1} parent=1 // pred_fallthru
      _
    // Predicated region
    $region22: #{tpu_custom_call.1} parent=1 // pred_check
      _
    $region23: #{tpu_custom_call.1} parent=1 // pred_check_branch
      %30 = sbr.rel (0) target = $region25
    $region24: #{tpu_custom_call.1} parent=1 // pred_region
      _
    $region25: #{tpu_custom_call.1} parent=1 // pred_fallthru
      _
    // Predicated region
    $region26: #{tpu_custom_call.1} parent=1 // pred_check
      _
    $region27: #{tpu_custom_call.1} parent=1 // pred_check_branch
      %32 = sbr.rel (0) target = $region29
    $region28: #{tpu_custom_call.1} parent=1 // pred_region
      %34 = vsyncadd [#allocation4], 0
      %s35 = sshll.u32 %s6, 4
      %s36 = int_to_ptr.hbm [resolvable:$true] %s35
      %s37 = sshll.u32 [#allocation3], 4
      %s38 = int_to_ptr.vmem [resolvable:$true] %s37
      %43 = dma.hbm_to_vmem [thread:$0]  %s36, 512, %s38, [#allocation4], 128, 128, 8
    $region29: #{tpu_custom_call.1} parent=1 // pred_fallthru
      _
    // Predicated region
    $region30: #{tpu_custom_call.1} parent=1 // pred_check
      _
    $region31: #{tpu_custom_call.1} parent=1 // pred_check_branch
      %45 = sbr.rel (0) target = $region33
    $region32: #{tpu_custom_call.1} parent=1 // pred_region
      %47 = vsyncadd [#allocation7], 0
      %s48 = sshll.u32 %s7, 4
      %s49 = int_to_ptr.hbm [resolvable:$true] %s48
      %s50 = sshll.u32 [#allocation6], 4
      %s51 = int_to_ptr.vmem [resolvable:$true] %s50
      %56 = dma.hbm_to_vmem [thread:$0]  %s49, 512, %s51, [#allocation7], 128, 128, 8
    $region33: #{tpu_custom_call.1} parent=1 // pred_fallthru
      _
    // Predicated region
    $region34: #{tpu_custom_call.1} parent=1 // pred_check
      _
    $region35: #{tpu_custom_call.1} parent=1 // pred_check_branch
      %58 = sbr.rel (0) target = $region37
    $region36: #{tpu_custom_call.1} parent=1 // pred_region
      %60 = vsyncadd [#allocation7], 0
      %s61 = sshll.u32 %s8, 4
      %s62 = int_to_ptr.hbm [resolvable:$true] %s61
      %s63 = sshll.u32 [#allocation8], 4
      %s64 = int_to_ptr.vmem [resolvable:$true] %s63
      %69 = dma.hbm_to_vmem [thread:$0]  %s62, 512, %s64, [#allocation7], 128, 128, 8
    $region37: #{tpu_custom_call.1} parent=1 // pred_fallthru
      _
    // Predicated region
    $region38: #{tpu_custom_call.1} parent=1 // pred_check
      _
    $region39: #{tpu_custom_call.1} parent=1 // pred_check_branch
      %71 = sbr.rel (0) target = $region41
    $region40: #{tpu_custom_call.1} parent=1 // pred_region
      _
    $region41: #{tpu_custom_call.1} parent=1 // pred_fallthru
      _
    // Predicated region
    $region42: #{tpu_custom_call.1} parent=1 // pred_check
      _
    $region43: #{tpu_custom_call.1} parent=1 // pred_check_branch
      %73 = sbr.rel (0) target = $region45
    $region44: #{tpu_custom_call.1} parent=1 // pred_region
      %75 = dma.done [#allocation4], 512
    $region45: #{tpu_custom_call.1} parent=1 // pred_fallthru
      _
    // Predicated region
    $region46: #{tpu_custom_call.1} parent=1 // pred_check
      _
    $region47: #{tpu_custom_call.1} parent=1 // pred_check_branch
      %77 = sbr.rel (0) target = $region49
    $region48: #{tpu_custom_call.1} parent=1 // pred_region
      %79 = dma.done [#allocation7], 512
    $region49: #{tpu_custom_call.1} parent=1 // pred_fallthru
      _
    // Predicated region
    $region50: #{tpu_custom_call.1} parent=1 // pred_check
      _
    $region51: #{tpu_custom_call.1} parent=1 // pred_check_branch
      %81 = sbr.rel (0) target = $region53
    $region52: #{tpu_custom_call.1} parent=1 // pred_region
      %83 = dma.done [#allocation7], 512
    $region53: #{tpu_custom_call.1} parent=1 // pred_fallthru
      _
    %v84 = vld [vmem:[%s9] sm:$0x1]
    %v85 = vld [vmem:[%s9 + $0x1] sm:$0x1]
    %v86 = vld [vmem:[%s9 + $0x2] sm:$0x1]
    %v87 = vld [vmem:[%s2] sm:$0xff]
    %v88 = vld [vmem:[%s2 + $0x8] sm:$0xff]
    %v89 = vld [vmem:[%s2 + $0x10] sm:$0xff]
    %v90 = vld [vmem:[%s2 + $0x18] sm:$0xff]
    %v91 = vld [vmem:[%s2 + $0x20] sm:$0xff]
    %v92 = vld [vmem:[%s2 + $0x28] sm:$0xff]
    %v93 = vld [vmem:[%s2 + $0x30] sm:$0xff]
    %v94 = vld [vmem:[%s2 + $0x38] sm:$0xff]
    %v95 = vld [vmem:[%s4] sm:$0xff]
    %v96 = vld [vmem:[%s4 + $0x8] sm:$0xff]
    %v97 = vld [vmem:[%s4 + $0x10] sm:$0xff]
    %v98 = vld [vmem:[%s4 + $0x18] sm:$0xff]
    %vm99 = vcmask 261120
    %v101 = vsel %vm99, %v87, 0
    %v104 = vsel %vm99, %v88, 0
    %v107 = vsel %vm99, %v89, 0
    %v110 = vsel %vm99, %v90, 0
    %v113 = vsel %vm99, %v91, 0
    %v116 = vsel %vm99, %v92, 0
    %v119 = vsel %vm99, %v93, 0
    %v122 = vsel %vm99, %v94, 0
    %124 = vmatpush.msra.mxu0 0.0
    %125 = vmatpush.msra.mxu0 0.0
    %126 = vmatpush.msra.mxu0 0.0
    %127 = vmatpush.msra.mxu0 0.0
    %128 = vmatpush.msra.mxu0 0.0
    %129 = vmatpush.msra.mxu0 0.0
    %130 = vmatpush.msra.mxu0 0.0
    %131 = vmatpush.msra.mxu0 0.0
    %132 = vmatpush.msra.mxu0 0.0
    %133 = vmatpush.msra.mxu0 0.0
    %134 = vmatpush.msra.mxu0 0.0
    %135 = vmatpush.msra.mxu0 0.0
    %136 = vmatpush.msra.mxu0 %v98
    %137 = vmatpush.msra.mxu0 %v97
    %138 = vmatpush.msra.mxu0 %v96
    %139 = vmatpush.msra.mxu0 %v95
    %140 = vmatmul.f32.gmra.mxu0 %v101
    %v141 = vpop.f32.mrf.mxu0
    %v142 = vadd.f32 0.0, %v141
    %143 = vmatmul.f32.gmra.mxu0 %v104
    %v144 = vpop.f32.mrf.mxu0
    %v145 = vadd.f32 0.0, %v144
    %146 = vmatmul.f32.gmra.mxu0 %v107
    %v147 = vpop.f32.mrf.mxu0
    %v148 = vadd.f32 0.0, %v147
    %149 = vmatmul.f32.gmra.mxu0 %v110
    %v150 = vpop.f32.mrf.mxu0
    %v151 = vadd.f32 0.0, %v150
    %152 = vmatmul.f32.gmra.mxu0 %v113
    %v153 = vpop.f32.mrf.mxu0
    %v154 = vadd.f32 0.0, %v153
    %155 = vmatmul.f32.gmra.mxu0 %v116
    %v156 = vpop.f32.mrf.mxu0
    %v157 = vadd.f32 0.0, %v156
    %158 = vmatmul.f32.gmra.mxu0 %v119
    %v159 = vpop.f32.mrf.mxu0
    %v160 = vadd.f32 0.0, %v159
    %161 = vmatmul.f32.gmra.mxu0 %v122
    %v162 = vpop.f32.mrf.mxu0
    %v163 = vadd.f32 0.0, %v162
    %164 = vdwg.mxu0
    %v165 = vld [vmem:[%s3] sm:$0xff]
    %v166 = vld [vmem:[%s4 + $0x20] sm:$0xff]
    %v167 = vld [vmem:[%s4 + $0x28] sm:$0xff]
    %v168 = vld [vmem:[%s4 + $0x30] sm:$0xff]
    %v169 = vld [vmem:[%s4 + $0x38] sm:$0xff]
    %v170 = vperm.slane %v84, 0
    %v172 = vsel %vm99, %v165, 0
    %174 = vmatpush.msra.mxu0 0.0
    %175 = vmatpush.msra.mxu0 0.0
    %176 = vmatpush.msra.mxu0 0.0
    %177 = vmatpush.msra.mxu0 0.0
    %178 = vmatpush.msra.mxu0 0.0
    %179 = vmatpush.msra.mxu0 0.0
    %180 = vmatpush.msra.mxu0 0.0
    %181 = vmatpush.msra.mxu0 0.0
    %182 = vmatpush.msra.mxu0 0.0
    %183 = vmatpush.msra.mxu0 0.0
    %184 = vmatpush.msra.mxu0 0.0
    %185 = vmatpush.msra.mxu0 0.0
    %186 = vmatpush.msra.mxu0 %v169
    %187 = vmatpush.msra.mxu0 %v168
    %188 = vmatpush.msra.mxu0 %v167
    %189 = vmatpush.msra.mxu0 %v166
    %190 = vmatmul.f32.gmra.mxu0 %v172
    %v191 = vpop.f32.mrf.mxu0
    %v192 = vadd.f32 %v170, %v191
    %193 = vdwg.mxu0
    %v194 = vld [vmem:[%s5] sm:$0xff]
    %v195 = vld [vmem:[%s5 + $0x8] sm:$0xff]
    %v196 = vld [vmem:[%s5 + $0x10] sm:$0xff]
    %v197 = vld [vmem:[%s5 + $0x18] sm:$0xff]
    %v198 = vadd.f32 %v142, %v192
    %v200 = vsel %vm99, 0.0, 0
    %202 = vmatpush.msra.mxu0 0.0
    %203 = vmatpush.msra.mxu0 0.0
    %204 = vmatpush.msra.mxu0 0.0
    %205 = vmatpush.msra.mxu0 0.0
    %206 = vmatpush.msra.mxu0 0.0
    %207 = vmatpush.msra.mxu0 0.0
    %208 = vmatpush.msra.mxu0 0.0
    %209 = vmatpush.msra.mxu0 0.0
    %210 = vmatpush.msra.mxu0 0.0
    %211 = vmatpush.msra.mxu0 0.0
    %212 = vmatpush.msra.mxu0 0.0
    %213 = vmatpush.msra.mxu0 0.0
    %214 = vmatpush.msra.mxu0 %v197
    %215 = vmatpush.msra.mxu0 %v196
    %216 = vmatpush.msra.mxu0 %v195
    %217 = vmatpush.msra.mxu0 %v194
    %218 = vmatmul.f32.gmra.mxu0 %v200
    %v219 = vpop.f32.mrf.mxu0
    %v220 = vadd.f32 0.0, %v219
    %221 = vdwg.mxu0
    %v222 = vadd.f32 %v198, %v220
    %v223 = vxor.u32 %v222, 2147483648
    %v224 = vmul.f32 %v223, 1.442695
    %v225 = vpow.pop %v224
    %v226 = vadd.f32 %v225, 1.0
    %v227 = vrcp.pop %v226
    %v228 = vmul.f32 %v226, %v227
    %v229 = vsub.f32 1.0, %v228
    %v230 = vmul.f32 %v227, %v229
    %v231 = vadd.f32 %v227, %v230
    %vm232 = vweird.f32 %v226
    %vm233 = vweird.f32 %v227
    %vm234 = vmor %vm232, %vm233
    %v235 = vsel %vm234, %v227, %v231
    %v236 = vand.u32 2147483647, %v226
    %vm237 = vcmp.eq.f32.partialorder %v236, 8.507059e+37
    %v238 = vand.u32 %v226, 2147483648
    %v239 = vor.u32 1.1754944e-38, %v238
    %v240 = vsel %vm237, %v239, %v235
    %v241 = vmul.f32 1.0, %v240
    %v242 = vtanh.pop %v222
    %v243 = vmul.f32 %v241, 0.0
    %245 = vrot.lane.b32.xlu0 %v242, 32
    %v246 = vpop.permute.xlu0 %245
    %v248 = vmul.f32 %v241, %v246
    %250 = vrot.lane.b32.xlu0 %v248, 32
    %v251 = vpop.permute.xlu0 %250
    %v253 = vadd.f32 %v243, %v251
    %v254 = vtanh.pop %v253
    %256 = vrot.lane.b32.xlu0 %v254, 32
    %v257 = vpop.permute.xlu0 %256
    %v259 = vmul.f32 %v241, %v257
    %v260 = vadd.f32 %v145, %v192
    %262 = vrot.lane.b32.xlu0 %v259, 64
    %v263 = vpop.permute.xlu0 %262
    %v264 = vsel %vm99, %v263, 0
    %266 = vmatpush.msra.mxu0 0.0
    %267 = vmatpush.msra.mxu0 0.0
    %268 = vmatpush.msra.mxu0 0.0
    %269 = vmatpush.msra.mxu0 0.0
    %270 = vmatpush.msra.mxu0 0.0
    %271 = vmatpush.msra.mxu0 0.0
    %272 = vmatpush.msra.mxu0 0.0
    %273 = vmatpush.msra.mxu0 0.0
    %274 = vmatpush.msra.mxu0 0.0
    %275 = vmatpush.msra.mxu0 0.0
    %276 = vmatpush.msra.mxu0 0.0
    %277 = vmatpush.msra.mxu0 0.0
    %278 = vmatpush.msra.mxu0 %v197
    %279 = vmatpush.msra.mxu0 %v196
    %280 = vmatpush.msra.mxu0 %v195
    %281 = vmatpush.msra.mxu0 %v194
    %282 = vmatmul.f32.gmra.mxu0 %v264
    %v283 = vpop.f32.mrf.mxu0
    %v284 = vadd.f32 0.0, %v283
    %285 = vdwg.mxu0
    %v286 = vadd.f32 %v260, %v284
    %v287 = vxor.u32 %v286, 2147483648
    %v288 = vmul.f32 %v287, 1.442695
    %v289 = vpow.pop %v288
    %v290 = vadd.f32 %v289, 1.0
    %v291 = vrcp.pop %v290
    %v292 = vmul.f32 %v290, %v291
    %v293 = vsub.f32 1.0, %v292
    %v294 = vmul.f32 %v291, %v293
    %v295 = vadd.f32 %v291, %v294
    %vm296 = vweird.f32 %v290
    %vm297 = vweird.f32 %v291
    %vm298 = vmor %vm296, %vm297
    %v299 = vsel %vm298, %v291, %v295
    %v300 = vand.u32 2147483647, %v290
    %vm301 = vcmp.eq.f32.partialorder %v300, 8.507059e+37
    %v302 = vand.u32 %v290, 2147483648
    %v303 = vor.u32 1.1754944e-38, %v302
    %v304 = vsel %vm301, %v303, %v299
    %v305 = vmul.f32 1.0, %v304
    %v306 = vtanh.pop %v286
    %v307 = vmul.f32 %v305, %v253
    %309 = vrot.lane.b32.xlu0 %v306, 32
    %v310 = vpop.permute.xlu0 %309
    %v312 = vmul.f32 %v305, %v310
    %314 = vrot.lane.b32.xlu0 %v312, 32
    %v315 = vpop.permute.xlu0 %314
    %v317 = vadd.f32 %v307, %v315
    %v318 = vtanh.pop %v317
    %320 = vrot.lane.b32.xlu0 %v318, 32
    %v321 = vpop.permute.xlu0 %320
    %v323 = vmul.f32 %v305, %v321
    %v324 = vadd.f32 %v148, %v192
    %326 = vrot.lane.b32.xlu0 %v323, 64
    %v327 = vpop.permute.xlu0 %326
    %v328 = vsel %vm99, %v327, 0
    %330 = vmatpush.msra.mxu0 0.0
    %331 = vmatpush.msra.mxu0 0.0
    %332 = vmatpush.msra.mxu0 0.0
    %333 = vmatpush.msra.mxu0 0.0
    %334 = vmatpush.msra.mxu0 0.0
    %335 = vmatpush.msra.mxu0 0.0
    %336 = vmatpush.msra.mxu0 0.0
    %337 = vmatpush.msra.mxu0 0.0
    %338 = vmatpush.msra.mxu0 0.0
    %339 = vmatpush.msra.mxu0 0.0
    %340 = vmatpush.msra.mxu0 0.0
    %341 = vmatpush.msra.mxu0 0.0
    %342 = vmatpush.msra.mxu0 %v197
    %343 = vmatpush.msra.mxu0 %v196
    %344 = vmatpush.msra.mxu0 %v195
    %345 = vmatpush.msra.mxu0 %v194
    %346 = vmatmul.f32.gmra.mxu0 %v328
    %v347 = vpop.f32.mrf.mxu0
    %v348 = vadd.f32 0.0, %v347
    %349 = vdwg.mxu0
    %v350 = vadd.f32 %v324, %v348
    %v351 = vxor.u32 %v350, 2147483648
    %v352 = vmul.f32 %v351, 1.442695
    %v353 = vpow.pop %v352
    %v354 = vadd.f32 %v353, 1.0
    %v355 = vrcp.pop %v354
    %v356 = vmul.f32 %v354, %v355
    %v357 = vsub.f32 1.0, %v356
    %v358 = vmul.f32 %v355, %v357
    %v359 = vadd.f32 %v355, %v358
    %vm360 = vweird.f32 %v354
    %vm361 = vweird.f32 %v355
    %vm362 = vmor %vm360, %vm361
    %v363 = vsel %vm362, %v355, %v359
    %v364 = vand.u32 2147483647, %v354
    %vm365 = vcmp.eq.f32.partialorder %v364, 8.507059e+37
    %v366 = vand.u32 %v354, 2147483648
    %v367 = vor.u32 1.1754944e-38, %v366
    %v368 = vsel %vm365, %v367, %v363
    %v369 = vmul.f32 1.0, %v368
    %v370 = vtanh.pop %v350
    %v371 = vmul.f32 %v369, %v317
    %373 = vrot.lane.b32.xlu0 %v370, 32
    %v374 = vpop.permute.xlu0 %373
    %v376 = vmul.f32 %v369, %v374
    %378 = vrot.lane.b32.xlu0 %v376, 32
    %v379 = vpop.permute.xlu0 %378
    %v381 = vadd.f32 %v371, %v379
    %v382 = vtanh.pop %v381
    %384 = vrot.lane.b32.xlu0 %v382, 32
    %v385 = vpop.permute.xlu0 %384
    %v387 = vmul.f32 %v369, %v385
    %v388 = vadd.f32 %v151, %v192
    %390 = vrot.lane.b32.xlu0 %v387, 64
    %v391 = vpop.permute.xlu0 %390
    %v392 = vsel %vm99, %v391, 0
    %394 = vmatpush.msra.mxu0 0.0
    %395 = vmatpush.msra.mxu0 0.0
    %396 = vmatpush.msra.mxu0 0.0
    %397 = vmatpush.msra.mxu0 0.0
    %398 = vmatpush.msra.mxu0 0.0
    %399 = vmatpush.msra.mxu0 0.0
    %400 = vmatpush.msra.mxu0 0.0
    %401 = vmatpush.msra.mxu0 0.0
    %402 = vmatpush.msra.mxu0 0.0
    %403 = vmatpush.msra.mxu0 0.0
    %404 = vmatpush.msra.mxu0 0.0
    %405 = vmatpush.msra.mxu0 0.0
    %406 = vmatpush.msra.mxu0 %v197
    %407 = vmatpush.msra.mxu0 %v196
    %408 = vmatpush.msra.mxu0 %v195
    %409 = vmatpush.msra.mxu0 %v194
    %410 = vmatmul.f32.gmra.mxu0 %v392
    %v411 = vpop.f32.mrf.mxu0
    %v412 = vadd.f32 0.0, %v411
    %413 = vdwg.mxu0
    %v414 = vadd.f32 %v388, %v412
    %v415 = vxor.u32 %v414, 2147483648
    %v416 = vmul.f32 %v415, 1.442695
    %v417 = vpow.pop %v416
    %v418 = vadd.f32 %v417, 1.0
    %v419 = vrcp.pop %v418
    %v420 = vmul.f32 %v418, %v419
    %v421 = vsub.f32 1.0, %v420
    %v422 = vmul.f32 %v419, %v421
    %v423 = vadd.f32 %v419, %v422
    %vm424 = vweird.f32 %v418
    %vm425 = vweird.f32 %v419
    %vm426 = vmor %vm424, %vm425
    %v427 = vsel %vm426, %v419, %v423
    %v428 = vand.u32 2147483647, %v418
    %vm429 = vcmp.eq.f32.partialorder %v428, 8.507059e+37
    %v430 = vand.u32 %v418, 2147483648
    %v431 = vor.u32 1.1754944e-38, %v430
    %v432 = vsel %vm429, %v431, %v427
    %v433 = vmul.f32 1.0, %v432
    %v434 = vtanh.pop %v414
    %v435 = vmul.f32 %v433, %v381
    %437 = vrot.lane.b32.xlu0 %v434, 32
    %v438 = vpop.permute.xlu0 %437
    %v440 = vmul.f32 %v433, %v438
    %442 = vrot.lane.b32.xlu0 %v440, 32
    %v443 = vpop.permute.xlu0 %442
    %v445 = vadd.f32 %v435, %v443
    %v446 = vtanh.pop %v445
    %448 = vrot.lane.b32.xlu0 %v446, 32
    %v449 = vpop.permute.xlu0 %448
    %v451 = vmul.f32 %v433, %v449
    %v452 = vadd.f32 %v154, %v192
    %454 = vrot.lane.b32.xlu0 %v451, 64
    %v455 = vpop.permute.xlu0 %454
    %v456 = vsel %vm99, %v455, 0
    %458 = vmatpush.msra.mxu0 0.0
    %459 = vmatpush.msra.mxu0 0.0
    %460 = vmatpush.msra.mxu0 0.0
    %461 = vmatpush.msra.mxu0 0.0
    %462 = vmatpush.msra.mxu0 0.0
    %463 = vmatpush.msra.mxu0 0.0
    %464 = vmatpush.msra.mxu0 0.0
    %465 = vmatpush.msra.mxu0 0.0
    %466 = vmatpush.msra.mxu0 0.0
    %467 = vmatpush.msra.mxu0 0.0
    %468 = vmatpush.msra.mxu0 0.0
    %469 = vmatpush.msra.mxu0 0.0
    %470 = vmatpush.msra.mxu0 %v197
    %471 = vmatpush.msra.mxu0 %v196
    %472 = vmatpush.msra.mxu0 %v195
    %473 = vmatpush.msra.mxu0 %v194
    %474 = vmatmul.f32.gmra.mxu0 %v456
    %v475 = vpop.f32.mrf.mxu0
    %v476 = vadd.f32 0.0, %v475
    %477 = vdwg.mxu0
    %v478 = vadd.f32 %v452, %v476
    %v479 = vxor.u32 %v478, 2147483648
    %v480 = vmul.f32 %v479, 1.442695
    %v481 = vpow.pop %v480
    %v482 = vadd.f32 %v481, 1.0
    %v483 = vrcp.pop %v482
    %v484 = vmul.f32 %v482, %v483
    %v485 = vsub.f32 1.0, %v484
    %v486 = vmul.f32 %v483, %v485
    %v487 = vadd.f32 %v483, %v486
    %vm488 = vweird.f32 %v482
    %vm489 = vweird.f32 %v483
    %vm490 = vmor %vm488, %vm489
    %v491 = vsel %vm490, %v483, %v487
    %v492 = vand.u32 2147483647, %v482
    %vm493 = vcmp.eq.f32.partialorder %v492, 8.507059e+37
    %v494 = vand.u32 %v482, 2147483648
    %v495 = vor.u32 1.1754944e-38, %v494
    %v496 = vsel %vm493, %v495, %v491
    %v497 = vmul.f32 1.0, %v496
    %v498 = vtanh.pop %v478
    %v499 = vmul.f32 %v497, %v445
    %501 = vrot.lane.b32.xlu0 %v498, 32
    %v502 = vpop.permute.xlu0 %501
    %v504 = vmul.f32 %v497, %v502
    %506 = vrot.lane.b32.xlu0 %v504, 32
    %v507 = vpop.permute.xlu0 %506
    %v509 = vadd.f32 %v499, %v507
    %v510 = vtanh.pop %v509
    %512 = vrot.lane.b32.xlu0 %v510, 32
    %v513 = vpop.permute.xlu0 %512
    %v515 = vmul.f32 %v497, %v513
    %v516 = vadd.f32 %v157, %v192
    %518 = vrot.lane.b32.xlu0 %v515, 64
    %v519 = vpop.permute.xlu0 %518
    %v520 = vsel %vm99, %v519, 0
    %522 = vmatpush.msra.mxu0 0.0
    %523 = vmatpush.msra.mxu0 0.0
    %524 = vmatpush.msra.mxu0 0.0
    %525 = vmatpush.msra.mxu0 0.0
    %526 = vmatpush.msra.mxu0 0.0
    %527 = vmatpush.msra.mxu0 0.0
    %528 = vmatpush.msra.mxu0 0.0
    %529 = vmatpush.msra.mxu0 0.0
    %530 = vmatpush.msra.mxu0 0.0
    %531 = vmatpush.msra.mxu0 0.0
    %532 = vmatpush.msra.mxu0 0.0
    %533 = vmatpush.msra.mxu0 0.0
    %534 = vmatpush.msra.mxu0 %v197
    %535 = vmatpush.msra.mxu0 %v196
    %536 = vmatpush.msra.mxu0 %v195
    %537 = vmatpush.msra.mxu0 %v194
    %538 = vmatmul.f32.gmra.mxu0 %v520
    %v539 = vpop.f32.mrf.mxu0
    %v540 = vadd.f32 0.0, %v539
    %541 = vdwg.mxu0
    %v542 = vadd.f32 %v516, %v540
    %v543 = vxor.u32 %v542, 2147483648
    %v544 = vmul.f32 %v543, 1.442695
    %v545 = vpow.pop %v544
    %v546 = vadd.f32 %v545, 1.0
    %v547 = vrcp.pop %v546
    %v548 = vmul.f32 %v546, %v547
    %v549 = vsub.f32 1.0, %v548
    %v550 = vmul.f32 %v547, %v549
    %v551 = vadd.f32 %v547, %v550
    %vm552 = vweird.f32 %v546
    %vm553 = vweird.f32 %v547
    %vm554 = vmor %vm552, %vm553
    %v555 = vsel %vm554, %v547, %v551
    %v556 = vand.u32 2147483647, %v546
    %vm557 = vcmp.eq.f32.partialorder %v556, 8.507059e+37
    %v558 = vand.u32 %v546, 2147483648
    %v559 = vor.u32 1.1754944e-38, %v558
    %v560 = vsel %vm557, %v559, %v555
    %v561 = vmul.f32 1.0, %v560
    %v562 = vtanh.pop %v542
    %v563 = vmul.f32 %v561, %v509
    %565 = vrot.lane.b32.xlu0 %v562, 32
    %v566 = vpop.permute.xlu0 %565
    %v568 = vmul.f32 %v561, %v566
    %570 = vrot.lane.b32.xlu0 %v568, 32
    %v571 = vpop.permute.xlu0 %570
    %v573 = vadd.f32 %v563, %v571
    %v574 = vtanh.pop %v573
    %576 = vrot.lane.b32.xlu0 %v574, 32
    %v577 = vpop.permute.xlu0 %576
    %v579 = vmul.f32 %v561, %v577
    %v580 = vadd.f32 %v160, %v192
    %582 = vrot.lane.b32.xlu0 %v579, 64
    %v583 = vpop.permute.xlu0 %582
    %v584 = vsel %vm99, %v583, 0
    %586 = vmatpush.msra.mxu0 0.0
    %587 = vmatpush.msra.mxu0 0.0
    %588 = vmatpush.msra.mxu0 0.0
    %589 = vmatpush.msra.mxu0 0.0
    %590 = vmatpush.msra.mxu0 0.0
    %591 = vmatpush.msra.mxu0 0.0
    %592 = vmatpush.msra.mxu0 0.0
    %593 = vmatpush.msra.mxu0 0.0
    %594 = vmatpush.msra.mxu0 0.0
    %595 = vmatpush.msra.mxu0 0.0
    %596 = vmatpush.msra.mxu0 0.0
    %597 = vmatpush.msra.mxu0 0.0
    %598 = vmatpush.msra.mxu0 %v197
    %599 = vmatpush.msra.mxu0 %v196
    %600 = vmatpush.msra.mxu0 %v195
    %601 = vmatpush.msra.mxu0 %v194
    %602 = vmatmul.f32.gmra.mxu0 %v584
    %v603 = vpop.f32.mrf.mxu0
    %v604 = vadd.f32 0.0, %v603
    %605 = vdwg.mxu0
    %v606 = vadd.f32 %v580, %v604
    %v607 = vxor.u32 %v606, 2147483648
    %v608 = vmul.f32 %v607, 1.442695
    %v609 = vpow.pop %v608
    %v610 = vadd.f32 %v609, 1.0
    %v611 = vrcp.pop %v610
    %v612 = vmul.f32 %v610, %v611
    %v613 = vsub.f32 1.0, %v612
    %v614 = vmul.f32 %v611, %v613
    %v615 = vadd.f32 %v611, %v614
    %vm616 = vweird.f32 %v610
    %vm617 = vweird.f32 %v611
    %vm618 = vmor %vm616, %vm617
    %v619 = vsel %vm618, %v611, %v615
    %v620 = vand.u32 2147483647, %v610
    %vm621 = vcmp.eq.f32.partialorder %v620, 8.507059e+37
    %v622 = vand.u32 %v610, 2147483648
    %v623 = vor.u32 1.1754944e-38, %v622
    %v624 = vsel %vm621, %v623, %v619
    %v625 = vmul.f32 1.0, %v624
    %v626 = vtanh.pop %v606
    %v627 = vmul.f32 %v625, %v573
    %629 = vrot.lane.b32.xlu0 %v626, 32
    %v630 = vpop.permute.xlu0 %629
    %v632 = vmul.f32 %v625, %v630
    %634 = vrot.lane.b32.xlu0 %v632, 32
    %v635 = vpop.permute.xlu0 %634
    %v637 = vadd.f32 %v627, %v635
    %v638 = vtanh.pop %v637
    %640 = vrot.lane.b32.xlu0 %v638, 32
    %v641 = vpop.permute.xlu0 %640
    %v643 = vmul.f32 %v625, %v641
    %v644 = vadd.f32 %v163, %v192
    %646 = vrot.lane.b32.xlu0 %v643, 64
    %v647 = vpop.permute.xlu0 %646
    %v648 = vsel %vm99, %v647, 0
    %650 = vmatpush.msra.mxu0 0.0
    %651 = vmatpush.msra.mxu0 0.0
    %652 = vmatpush.msra.mxu0 0.0
    %653 = vmatpush.msra.mxu0 0.0
    %654 = vmatpush.msra.mxu0 0.0
    %655 = vmatpush.msra.mxu0 0.0
    %656 = vmatpush.msra.mxu0 0.0
    %657 = vmatpush.msra.mxu0 0.0
    %658 = vmatpush.msra.mxu0 0.0
    %659 = vmatpush.msra.mxu0 0.0
    %660 = vmatpush.msra.mxu0 0.0
    %661 = vmatpush.msra.mxu0 0.0
    %662 = vmatpush.msra.mxu0 %v197
    %663 = vmatpush.msra.mxu0 %v196
    %664 = vmatpush.msra.mxu0 %v195
    %665 = vmatpush.msra.mxu0 %v194
    %666 = vmatmul.f32.gmra.mxu0 %v648
    %v667 = vpop.f32.mrf.mxu0
    %v668 = vadd.f32 0.0, %v667
    %669 = vdwg.mxu0
    %v670 = vadd.f32 %v644, %v668
    %v671 = vxor.u32 %v670, 2147483648
    %v672 = vmul.f32 %v671, 1.442695
    %v673 = vpow.pop %v672
    %v674 = vadd.f32 %v673, 1.0
    %v675 = vrcp.pop %v674
    %v676 = vmul.f32 %v674, %v675
    %v677 = vsub.f32 1.0, %v676
    %v678 = vmul.f32 %v675, %v677
    %v679 = vadd.f32 %v675, %v678
    %vm680 = vweird.f32 %v674
    %vm681 = vweird.f32 %v675
    %vm682 = vmor %vm680, %vm681
    %v683 = vsel %vm682, %v675, %v679
    %v684 = vand.u32 2147483647, %v674
    %vm685 = vcmp.eq.f32.partialorder %v684, 8.507059e+37
    %v686 = vand.u32 %v674, 2147483648
    %v687 = vor.u32 1.1754944e-38, %v686
    %v688 = vsel %vm685, %v687, %v683
    %v689 = vmul.f32 1.0, %v688
    %v690 = vtanh.pop %v670
    %v691 = vmul.f32 %v689, %v637
    %693 = vrot.lane.b32.xlu0 %v690, 32
    %v694 = vpop.permute.xlu0 %693
    %v696 = vmul.f32 %v689, %v694
    %698 = vrot.lane.b32.xlu0 %v696, 32
    %v699 = vpop.permute.xlu0 %698
    %v701 = vadd.f32 %v691, %v699
    %v702 = vtanh.pop %v701
    %704 = vrot.lane.b32.xlu0 %v702, 32
    %v705 = vpop.permute.xlu0 %704
    %v707 = vmul.f32 %v689, %v705
    %v708 = vld [vmem:[%s1] sm:$0xff]
    %vm709 = vcmp.gt.s32.totalorder %v708, 0
    %vm710 = vcmp.gt.s32.totalorder %v708, 1
    %vm711 = vcmp.gt.s32.totalorder %v708, 2
    %vm712 = vcmp.gt.s32.totalorder %v708, 3
    %vm713 = vcmp.gt.s32.totalorder %v708, 4
    %vm714 = vcmp.gt.s32.totalorder %v708, 5
    %vm715 = vcmp.gt.s32.totalorder %v708, 6
    %vm716 = vcmp.gt.s32.totalorder %v708, 7
    %v717 = vsel %vm709, 1, 0
    %v718 = vsel %vm710, 1, 0
    %v719 = vsel %vm711, 1, 0
    %v720 = vsel %vm712, 1, 0
    %v721 = vsel %vm713, 1, 0
    %v722 = vsel %vm714, 1, 0
    %v723 = vsel %vm715, 1, 0
    %v724 = vsel %vm716, 1, 0
    %725 = vset.pattern.permute.xlu0 0
    %726 = vperm.xlu0 %725, %v717
    %v727 = vpop.permute.xlu0 %726
    %728 = vset.pattern.permute.xlu0 0
    %729 = vperm.xlu0 %728, %v718
    %v730 = vpop.permute.xlu0 %729
    %731 = vset.pattern.permute.xlu0 0
    %732 = vperm.xlu0 %731, %v719
    %v733 = vpop.permute.xlu0 %732
    %734 = vset.pattern.permute.xlu0 0
    %735 = vperm.xlu0 %734, %v720
    %v736 = vpop.permute.xlu0 %735
    %737 = vset.pattern.permute.xlu0 0
    %738 = vperm.xlu0 %737, %v721
    %v739 = vpop.permute.xlu0 %738
    %740 = vset.pattern.permute.xlu0 0
    %741 = vperm.xlu0 %740, %v722
    %v742 = vpop.permute.xlu0 %741
    %743 = vset.pattern.permute.xlu0 0
    %744 = vperm.xlu0 %743, %v723
    %v745 = vpop.permute.xlu0 %744
    %746 = vset.pattern.permute.xlu0 0
    %747 = vperm.xlu0 %746, %v724
    %v748 = vpop.permute.xlu0 %747
    %vm749 = vcmp.eq.s32.totalorder %v727, 1
    %vm750 = vcmp.eq.s32.totalorder %v730, 1
    %vm751 = vcmp.eq.s32.totalorder %v733, 1
    %vm752 = vcmp.eq.s32.totalorder %v736, 1
    %vm753 = vcmp.eq.s32.totalorder %v739, 1
    %vm754 = vcmp.eq.s32.totalorder %v742, 1
    %vm755 = vcmp.eq.s32.totalorder %v745, 1
    %vm756 = vcmp.eq.s32.totalorder %v748, 1
    %v757 = vsel %vm749, %v259, 0.0
    %v758 = vsel %vm750, %v323, 0.0
    %v759 = vsel %vm751, %v387, 0.0
    %v760 = vsel %vm752, %v451, 0.0
    %v761 = vsel %vm753, %v515, 0.0
    %v762 = vsel %vm754, %v579, 0.0
    %v763 = vsel %vm755, %v643, 0.0
    %v764 = vsel %vm756, %v707, 0.0
    %v765 = vld [vmem:[#allocation3] sm:$0xff]
    %v766 = vld [vmem:[#allocation3 + $0x8] sm:$0xff]
    %v767 = vld [vmem:[#allocation3 + $0x10] sm:$0xff]
    %v768 = vld [vmem:[#allocation3 + $0x18] sm:$0xff]
    %v769 = vperm.slane %v85, 0
    %778 = vrot.lane.b32.xlu0 %v757, 64
    %v779 = vpop.permute.xlu0 %778
    %780 = vrot.lane.b32.xlu0 %v758, 64
    %v781 = vpop.permute.xlu0 %780
    %782 = vrot.lane.b32.xlu0 %v759, 64
    %v783 = vpop.permute.xlu0 %782
    %784 = vrot.lane.b32.xlu0 %v760, 64
    %v785 = vpop.permute.xlu0 %784
    %786 = vrot.lane.b32.xlu0 %v761, 64
    %v787 = vpop.permute.xlu0 %786
    %788 = vrot.lane.b32.xlu0 %v762, 64
    %v789 = vpop.permute.xlu0 %788
    %790 = vrot.lane.b32.xlu0 %v763, 64
    %v791 = vpop.permute.xlu0 %790
    %792 = vrot.lane.b32.xlu0 %v764, 64
    %v793 = vpop.permute.xlu0 %792
    %v794 = vsel %vm99, %v779, 0
    %v796 = vsel %vm99, %v781, 0
    %v798 = vsel %vm99, %v783, 0
    %v800 = vsel %vm99, %v785, 0
    %v802 = vsel %vm99, %v787, 0
    %v804 = vsel %vm99, %v789, 0
    %v806 = vsel %vm99, %v791, 0
    %v808 = vsel %vm99, %v793, 0
    %810 = vmatpush.msra.mxu0 0.0
    %811 = vmatpush.msra.mxu0 0.0
    %812 = vmatpush.msra.mxu0 0.0
    %813 = vmatpush.msra.mxu0 0.0
    %814 = vmatpush.msra.mxu0 0.0
    %815 = vmatpush.msra.mxu0 0.0
    %816 = vmatpush.msra.mxu0 0.0
    %817 = vmatpush.msra.mxu0 0.0
    %818 = vmatpush.msra.mxu0 0.0
    %819 = vmatpush.msra.mxu0 0.0
    %820 = vmatpush.msra.mxu0 0.0
    %821 = vmatpush.msra.mxu0 0.0
    %822 = vmatpush.msra.mxu0 %v768
    %823 = vmatpush.msra.mxu0 %v767
    %824 = vmatpush.msra.mxu0 %v766
    %825 = vmatpush.msra.mxu0 %v765
    %826 = vmatmul.f32.gmra.mxu0 %v794
    %v827 = vpop.f32.mrf.mxu0
    %v828 = vadd.f32 %v769, %v827
    %829 = vmatmul.f32.gmra.mxu0 %v796
    %v830 = vpop.f32.mrf.mxu0
    %v831 = vadd.f32 %v769, %v830
    %832 = vmatmul.f32.gmra.mxu0 %v798
    %v833 = vpop.f32.mrf.mxu0
    %v834 = vadd.f32 %v769, %v833
    %835 = vmatmul.f32.gmra.mxu0 %v800
    %v836 = vpop.f32.mrf.mxu0
    %v837 = vadd.f32 %v769, %v836
    %838 = vmatmul.f32.gmra.mxu0 %v802
    %v839 = vpop.f32.mrf.mxu0
    %v840 = vadd.f32 %v769, %v839
    %841 = vmatmul.f32.gmra.mxu0 %v804
    %v842 = vpop.f32.mrf.mxu0
    %v843 = vadd.f32 %v769, %v842
    %844 = vmatmul.f32.gmra.mxu0 %v806
    %v845 = vpop.f32.mrf.mxu0
    %v846 = vadd.f32 %v769, %v845
    %847 = vmatmul.f32.gmra.mxu0 %v808
    %v848 = vpop.f32.mrf.mxu0
    %v849 = vadd.f32 %v769, %v848
    %850 = vdwg.mxu0
    %v851 = vld [vmem:[#allocation6] sm:$0xff]
    %v852 = vld [vmem:[#allocation6 + $0x8] sm:$0xff]
    %v853 = vld [vmem:[#allocation6 + $0x10] sm:$0xff]
    %v854 = vld [vmem:[#allocation6 + $0x18] sm:$0xff]
    %856 = vrot.lane.b32.xlu0 %v769, 96
    %v857 = vpop.permute.xlu0 %856
    %859 = vmatpush.msra.mxu0 0.0
    %860 = vmatpush.msra.mxu0 0.0
    %861 = vmatpush.msra.mxu0 0.0
    %862 = vmatpush.msra.mxu0 0.0
    %863 = vmatpush.msra.mxu0 0.0
    %864 = vmatpush.msra.mxu0 0.0
    %865 = vmatpush.msra.mxu0 0.0
    %866 = vmatpush.msra.mxu0 0.0
    %867 = vmatpush.msra.mxu0 0.0
    %868 = vmatpush.msra.mxu0 0.0
    %869 = vmatpush.msra.mxu0 0.0
    %870 = vmatpush.msra.mxu0 0.0
    %871 = vmatpush.msra.mxu0 %v854
    %872 = vmatpush.msra.mxu0 %v853
    %873 = vmatpush.msra.mxu0 %v852
    %874 = vmatpush.msra.mxu0 %v851
    %875 = vmatmul.f32.gmra.mxu0 %v172
    %v876 = vpop.f32.mrf.mxu0
    %v877 = vadd.f32 %v857, %v876
    %878 = vdwg.mxu0
    %879 = vrot.lane.b32.xlu0 %v769, 64
    %v880 = vpop.permute.xlu0 %879
    %v882 = vmul.f32 %v828, %v880
    %v883 = vmul.f32 %v831, %v880
    %v884 = vmul.f32 %v834, %v880
    %v885 = vmul.f32 %v837, %v880
    %v886 = vmul.f32 %v840, %v880
    %v887 = vmul.f32 %v843, %v880
    %v888 = vmul.f32 %v846, %v880
    %v889 = vmul.f32 %v849, %v880
    %v890 = vsel %vm99, %v882, 0.0
    %891 = vadd.xlane.f32.xlu0 %v890
    %v892 = vpop.xlane.xlu0 %891
    %v893 = vsel %vm99, %v883, 0.0
    %894 = vadd.xlane.f32.xlu0 %v893
    %v895 = vpop.xlane.xlu0 %894
    %v896 = vsel %vm99, %v884, 0.0
    %897 = vadd.xlane.f32.xlu0 %v896
    %v898 = vpop.xlane.xlu0 %897
    %v899 = vsel %vm99, %v885, 0.0
    %900 = vadd.xlane.f32.xlu0 %v899
    %v901 = vpop.xlane.xlu0 %900
    %v902 = vsel %vm99, %v886, 0.0
    %903 = vadd.xlane.f32.xlu0 %v902
    %v904 = vpop.xlane.xlu0 %903
    %v905 = vsel %vm99, %v887, 0.0
    %906 = vadd.xlane.f32.xlu0 %v905
    %v907 = vpop.xlane.xlu0 %906
    %v908 = vsel %vm99, %v888, 0.0
    %909 = vadd.xlane.f32.xlu0 %v908
    %v910 = vpop.xlane.xlu0 %909
    %v911 = vsel %vm99, %v889, 0.0
    %912 = vadd.xlane.f32.xlu0 %v911
    %v913 = vpop.xlane.xlu0 %912
    %914 = vrot.lane.b32.xlu0 %v769, 32
    %v915 = vpop.permute.xlu0 %914
    %v917 = vmul.f32 %v877, %v915
    %v918 = vsel %vm99, %v917, 0.0
    %919 = vadd.xlane.f32.xlu0 %v918
    %v920 = vpop.xlane.xlu0 %919
    %v921 = vadd.f32 %v892, %v920
    %v922 = vadd.f32 %v895, %v920
    %v923 = vadd.f32 %v898, %v920
    %v924 = vadd.f32 %v901, %v920
    %v925 = vadd.f32 %v904, %v920
    %v926 = vadd.f32 %v907, %v920
    %v927 = vadd.f32 %v910, %v920
    %v928 = vadd.f32 %v913, %v920
    %v929 = vtanh.pop %v921
    %v930 = vtanh.pop %v922
    %v931 = vtanh.pop %v923
    %v932 = vtanh.pop %v924
    %v933 = vtanh.pop %v925
    %v934 = vtanh.pop %v926
    %v935 = vtanh.pop %v927
    %v936 = vtanh.pop %v928
    %s937 = sld [smem:[#allocation2]]
    %v938 = vstv %s937
    %vm939 = vcmp.gt.s32.totalorder %v938, 0
    %vm940 = vcmp.gt.s32.totalorder %v938, 1
    %vm941 = vcmp.gt.s32.totalorder %v938, 2
    %vm942 = vcmp.gt.s32.totalorder %v938, 3
    %vm943 = vcmp.gt.s32.totalorder %v938, 4
    %vm944 = vcmp.gt.s32.totalorder %v938, 5
    %vm945 = vcmp.gt.s32.totalorder %v938, 6
    %vm946 = vcmp.gt.s32.totalorder %v938, 7
    %v947 = vmul.f32 %v929, 1.442695
    %v948 = vpow.pop %v947
    %v949 = vmul.f32 %v930, 1.442695
    %v950 = vpow.pop %v949
    %v951 = vmul.f32 %v931, 1.442695
    %v952 = vpow.pop %v951
    %v953 = vmul.f32 %v932, 1.442695
    %v954 = vpow.pop %v953
    %v955 = vmul.f32 %v933, 1.442695
    %v956 = vpow.pop %v955
    %v957 = vmul.f32 %v934, 1.442695
    %v958 = vpow.pop %v957
    %v959 = vmul.f32 %v935, 1.442695
    %v960 = vpow.pop %v959
    %v961 = vmul.f32 %v936, 1.442695
    %v962 = vpow.pop %v961
    %v963 = vsel %vm939, %v948, 0.0
    %v964 = vsel %vm940, %v950, 0.0
    %v965 = vsel %vm941, %v952, 0.0
    %v966 = vsel %vm942, %v954, 0.0
    %v967 = vsel %vm943, %v956, 0.0
    %v968 = vsel %vm944, %v958, 0.0
    %v969 = vsel %vm945, %v960, 0.0
    %v970 = vsel %vm946, %v962, 0.0
    %972 = vset.pattern.permute.xlu0 0
    %973 = vperm.xlu0 %972, %v963
    %v974 = vpop.permute.xlu0 %973
    %977 = vset.pattern.permute.xlu0 0
    %978 = vperm.xlu0 %977, %v964
    %v979 = vpop.permute.xlu0 %978
    %982 = vset.pattern.permute.xlu0 0
    %983 = vperm.xlu0 %982, %v965
    %v984 = vpop.permute.xlu0 %983
    %987 = vset.pattern.permute.xlu0 0
    %988 = vperm.xlu0 %987, %v966
    %v989 = vpop.permute.xlu0 %988
    %992 = vset.pattern.permute.xlu0 0
    %993 = vperm.xlu0 %992, %v967
    %v994 = vpop.permute.xlu0 %993
    %997 = vset.pattern.permute.xlu0 0
    %998 = vperm.xlu0 %997, %v968
    %v999 = vpop.permute.xlu0 %998
    %1002 = vset.pattern.permute.xlu0 0
    %1003 = vperm.xlu0 %1002, %v969
    %v1004 = vpop.permute.xlu0 %1003
    %1007 = vset.pattern.permute.xlu0 0
    %1008 = vperm.xlu0 %1007, %v970
    %v1009 = vpop.permute.xlu0 %1008
    %v1011 = vmul.f32 %v974, %v828
    %v1012 = vmul.f32 %v979, %v831
    %v1013 = vmul.f32 %v984, %v834
    %v1014 = vmul.f32 %v989, %v837
    %v1015 = vmul.f32 %v994, %v840
    %v1016 = vmul.f32 %v999, %v843
    %v1017 = vmul.f32 %v1004, %v846
    %v1018 = vmul.f32 %v1009, %v849
    %v1019 = vadd.f32 %v963, %v964
    %v1020 = vadd.f32 %v1011, %v1012
    %v1021 = vadd.f32 %v1019, %v965
    %v1022 = vadd.f32 %v1020, %v1013
    %v1023 = vadd.f32 %v1021, %v966
    %v1024 = vadd.f32 %v1022, %v1014
    %v1025 = vadd.f32 %v1023, %v967
    %v1026 = vadd.f32 %v1024, %v1015
    %v1027 = vadd.f32 %v1025, %v968
    %v1028 = vadd.f32 %v1026, %v1016
    %v1029 = vadd.f32 %v1027, %v969
    %v1030 = vadd.f32 %v1028, %v1017
    %v1031 = vadd.f32 %v1029, %v970
    %v1032 = vadd.f32 %v1030, %v1018
    %v1033 = vmax.f32 %v1031, 1e-30
    %1035 = vset.pattern.permute.xlu0 0
    %1036 = vperm.xlu0 %1035, %v1033
    %v1037 = vpop.permute.xlu0 %1036
    %v1039 = vrcp.pop %v1037
    %v1040 = vmul.f32 %v1037, %v1039
    %v1041 = vsub.f32 1.0, %v1040
    %v1042 = vmul.f32 %v1039, %v1041
    %v1043 = vadd.f32 %v1039, %v1042
    %vm1044 = vweird.f32 %v1037
    %vm1045 = vweird.f32 %v1039
    %vm1046 = vmor %vm1044, %vm1045
    %v1047 = vsel %vm1046, %v1039, %v1043
    %v1048 = vand.u32 2147483647, %v1037
    %vm1049 = vcmp.eq.f32.partialorder %v1048, 8.507059e+37
    %v1050 = vand.u32 %v1037, 2147483648
    %v1051 = vor.u32 1.1754944e-38, %v1050
    %v1052 = vsel %vm1049, %v1051, %v1047
    %v1053 = vmul.f32 %v1032, %v1052
    %v1054 = vld [vmem:[#allocation8] sm:$0xff]
    %v1055 = vld [vmem:[#allocation8 + $0x8] sm:$0xff]
    %v1056 = vld [vmem:[#allocation8 + $0x10] sm:$0xff]
    %v1057 = vld [vmem:[#allocation8 + $0x18] sm:$0xff]
    %v1058 = vperm.slane %v86, 0
    %v1060 = vsel %vm99, %v1053, 0
    %1062 = vmatpush.msra.mxu0 0.0
    %1063 = vmatpush.msra.mxu0 0.0
    %1064 = vmatpush.msra.mxu0 0.0
    %1065 = vmatpush.msra.mxu0 0.0
    %1066 = vmatpush.msra.mxu0 0.0
    %1067 = vmatpush.msra.mxu0 0.0
    %1068 = vmatpush.msra.mxu0 0.0
    %1069 = vmatpush.msra.mxu0 0.0
    %1070 = vmatpush.msra.mxu0 0.0
    %1071 = vmatpush.msra.mxu0 0.0
    %1072 = vmatpush.msra.mxu0 0.0
    %1073 = vmatpush.msra.mxu0 0.0
    %1074 = vmatpush.msra.mxu0 %v1057
    %1075 = vmatpush.msra.mxu0 %v1056
    %1076 = vmatpush.msra.mxu0 %v1055
    %1077 = vmatpush.msra.mxu0 %v1054
    %1078 = vmatmul.f32.gmra.mxu0 %v1060
    %v1079 = vpop.f32.mrf.mxu0
    %v1080 = vadd.f32 %v1058, %v1079
    %1081 = vdwg.mxu0
    %1082 = vst [vmem:[#allocation9] sm:$0xff] %v1080
    // Predicated region
    $region54: #{tpu_custom_call.1} parent=1 // pred_check
      _
    $region55: #{tpu_custom_call.1} parent=1 // pred_check_branch
      %1084 = sbr.rel (0) target = $region57
    $region56: #{tpu_custom_call.1} parent=1 // pred_region
      %1086 = vsyncadd [#allocation5], 0
      %s1088 = sshll.u32 [#allocation9], 4
      %s1089 = int_to_ptr.vmem [resolvable:$true] %s1088
      %s1090 = sshll.u32 %s10, 4
      %s1091 = int_to_ptr.hbm [resolvable:$true] %s1090
      %1093 = dma.vmem_to_hbm [thread:$0]  %s1089, 128, %s1091, [#allocation5]
    $region57: #{tpu_custom_call.1} parent=1 // pred_fallthru
      _
    // Predicated region
    $region58: #{tpu_custom_call.1} parent=1 // pred_check
      _
    $region59: #{tpu_custom_call.1} parent=1 // pred_check_branch
      %1095 = sbr.rel (0) target = $region61
    $region60: #{tpu_custom_call.1} parent=1 // pred_region
      %1097 = dma.done [#allocation5], 128
    $region61: #{tpu_custom_call.1} parent=1 // pred_fallthru
      _
    %1098 = vsyncpa [#allocation4], 1
    %1099 = vsyncpa [#allocation7], 1
    %1100 = vsyncpa [#allocation5], 1

</llo_original>
